<compile_context>
chip_gen: v7x
topology: tpu7x:2x2x1
jax: 0.10.0
libtpu: 0.0.40
codegen_flags: <defaults>
</compile_context>

<pallas_src>
import functools
import math

import jax
import jax.numpy as jnp
import numpy as np
from jax.experimental import pallas as pl
from jax.experimental.pallas import tpu as pltpu

# ---------------- model config (small, consistent with the module) ----------------
D_MODEL = 32
N_HEADS = 4
HEAD_DIM = D_MODEL // N_HEADS
HIDDEN = 64           # feed-forward hidden size (2*HIDDEN == 128 -> lane-dense matmul)
BATCH = 2
SEQ = 8

# constants from NormalizedTransformerBlock.__init__ and the nGPT attention / FFN
ATTN_ALPHA_INIT_VALUE = 0.05
ATTN_ALPHA_INIT_SCALING = 1.0 / math.sqrt(D_MODEL)
MLP_ALPHA_INIT_VALUE = 0.05
MLP_ALPHA_INIT_SCALING = 1.0 / math.sqrt(D_MODEL)
SQ_INIT_VALUE = 1.0
SQ_INIT_SCALING = 1.0 / math.sqrt(D_MODEL)
SK_INIT_VALUE = 1.0
SK_INIT_SCALING = 1.0 / math.sqrt(D_MODEL)
SU_INIT_VALUE = 1.0    # scale on the silu (w1) branch of the FFN
SU_INIT_SCALING = 1.0
SV_INIT_VALUE = 1.0    # scale on the linear (w3) branch of the FFN
SV_INIT_SCALING = 1.0


def _l2_normalize(x):
    # matches olmo_core l2_normalize: x / ||x||_2 along the last dim (no eps)
    return x * jax.lax.rsqrt(jnp.sum(x * x, axis=-1, keepdims=True))


def ngpt_block_kernel(x_ref, wqkv_ref, wo3_ref, w13_ref, w2_ref, alphas_ref, out_ref):
    x = x_ref[...]                                  # (T, D) f32 -- one full sequence
    t = x.shape[0]

    # -------------------- NormalizedAttention --------------------
    # sq / sk / sqrt(head_dim) are pre-folded into the q / k columns of wqkv, so one
    # fused bf16 MXU matmul does projections + all constant scaling.
    qkv = jnp.dot(x.astype(jnp.bfloat16), wqkv_ref[...],
                  preferred_element_type=jnp.float32)          # (T, 3D)
    q = qkv[:, :D_MODEL]
    k = qkv[:, D_MODEL:2 * D_MODEL]
    v = qkv[:, 2 * D_MODEL:]

    def split_heads(a):   # (T, D) -> (H, T, HEAD_DIM), bf16 for the MXU
        return jnp.stack(
            [a[:, h * HEAD_DIM:(h + 1) * HEAD_DIM] for h in range(N_HEADS)],
            axis=0).astype(jnp.bfloat16)

    qh = split_heads(q)
    kh = split_heads(k)
    vh = split_heads(v)

    # additive causal mask (tile == one complete sequence, so plain causal), reused by
    # every head; finite -1e30 instead of -inf (no NaN hazard for masked rows)
    row = jax.lax.broadcasted_iota(jnp.int32, (t, t), 0)
    col = jax.lax.broadcasted_iota(jnp.int32, (t, t), 1)
    amask = jnp.where(col <= row, 0.0, -1e30).astype(jnp.float32)   # (T, T)

    # one batched qk^T, one vectorized masked softmax over all heads
    s = jnp.einsum('hqd,hkd->hqk', qh, kh,
                   preferred_element_type=jnp.float32) + amask[None, :, :]
    s = s - jnp.max(s, axis=-1, keepdims=True)
    p = jnp.exp(s)
    p = p * pl.reciprocal(jnp.sum(p, axis=-1, keepdims=True), approx=True)

    # batched p@v, then per-head output projection summed over heads (no lane concat)
    att = jnp.einsum('hqk,hkd->hqd', p.astype(jnp.bfloat16), vh,
                     preferred_element_type=jnp.float32)             # (H, T, HEAD_DIM)
    attn_out = jnp.einsum('hqd,hdn->hqn', att.astype(jnp.bfloat16), wo3_ref[...],
                          preferred_element_type=jnp.float32)        # (H, T, D)
    attn_out = jnp.sum(attn_out, axis=0)                             # (T, D)

    # ---- residual 1: h = l2norm(lerp(x, l2norm(attn(x)), |alpha|)) ----
    alphas = alphas_ref[...]                        # (2, D); constants already folded
    a_attn = jnp.abs(alphas[0:1, :])
    h1 = _l2_normalize(x + a_attn * (_l2_normalize(attn_out) - x))

    # -------------------- NormalizedFeedForward (SwiGLU) --------------------
    # su*sqrt(D) is pre-folded into the w1 columns, sv into the w3 columns; the fused
    # matmul output is exactly 128 lanes wide (lane-dense).
    gu = jnp.dot(h1.astype(jnp.bfloat16), w13_ref[...],
                 preferred_element_type=jnp.float32)                 # (T, 2*HIDDEN)
    gate = jax.nn.silu(gu[:, :HIDDEN])
    up = gu[:, HIDDEN:]
    ff = jnp.dot((gate * up).astype(jnp.bfloat16), w2_ref[...],
                 preferred_element_type=jnp.float32)                 # (T, D)

    # -------------------- residual 2 --------------------
    a_mlp = jnp.abs(alphas[1:2, :])
    out_ref[...] = _l2_normalize(h1 + a_mlp * (_l2_normalize(ff) - h1))


def prepare_params(params):
    """One-time parameter transform: fold every constant nGPT scale (sq, sk, su, sv,
    sqrt(head_dim) softmax scale, sqrt(d_model) silu pre-scale, alpha init ratios) into
    the weights, fuse the projection matrices, and store MXU operands in bf16."""
    sq = params["sq"][0] * (SQ_INIT_VALUE / SQ_INIT_SCALING)          # (D,)
    sk = params["sk"][0] * (SK_INIT_VALUE / SK_INIT_SCALING)          # (D,)
    su = params["su"][0] * (SU_INIT_VALUE / SU_INIT_SCALING)          # (HIDDEN,)
    sv = params["sv"][0] * (SV_INIT_VALUE / SV_INIT_SCALING)          # (HIDDEN,)

    softmax_scale = HEAD_DIM ** 0.5                                   # folded into q
    wq = params["wq"] * (sq * softmax_scale)[None, :]
    wk = params["wk"] * sk[None, :]
    wqkv = jnp.concatenate([wq, wk, params["wv"]], axis=1).astype(jnp.bfloat16)

    w1 = params["w1"] * (su * math.sqrt(D_MODEL))[None, :]
    w3 = params["w3"] * sv[None, :]
    w13 = jnp.concatenate([w1, w3], axis=1).astype(jnp.bfloat16)      # (D, 2*HIDDEN)

    # wo rows are head-major (concat of heads), so reshape to per-head (H, HEAD_DIM, D)
    wo3 = params["wo"].reshape(N_HEADS, HEAD_DIM, D_MODEL).astype(jnp.bfloat16)
    w2 = params["w2"].astype(jnp.bfloat16)

    alphas = jnp.concatenate(
        [params["attn_alpha"] * (ATTN_ALPHA_INIT_VALUE / ATTN_ALPHA_INIT_SCALING),
         params["mlp_alpha"] * (MLP_ALPHA_INIT_VALUE / MLP_ALPHA_INIT_SCALING)],
        axis=0)                                                       # (2, D) f32

    return dict(wqkv=wqkv, wo3=wo3, w13=w13, w2=w2, alphas=alphas)


def normalized_transformer_block(x, prepared):
    B, T, D = x.shape
    x_flat = x.reshape(B * T, D)          # flatten batch into rows; tile = one sequence

    out_flat = pl.pallas_call(
        ngpt_block_kernel,
        out_shape=jax.ShapeDtypeStruct((B * T, D), jnp.float32),
        grid_spec=pltpu.PrefetchScalarGridSpec(
            num_scalar_prefetch=0,
            grid=(B,),                                       # one grid step per sequence
            in_specs=[
                pl.BlockSpec((T, D), lambda b: (b, 0)),      # x rows for this sequence
                pl.BlockSpec(prepared["wqkv"].shape, lambda b: (0, 0)),     # resident
                pl.BlockSpec(prepared["wo3"].shape, lambda b: (0, 0, 0)),   # resident
                pl.BlockSpec(prepared["w13"].shape, lambda b: (0, 0)),      # resident
                pl.BlockSpec(prepared["w2"].shape, lambda b: (0, 0)),       # resident
                pl.BlockSpec(prepared["alphas"].shape, lambda b: (0, 0)),   # resident
            ],
            out_specs=pl.BlockSpec((T, D), lambda b: (b, 0)),
        ),
        compiler_params=pltpu.CompilerParams(
            dimension_semantics=("parallel",),               # megacore split on v7x
            vmem_limit_bytes=32 * 1024 * 1024,
        ),
    )(x_flat, prepared["wqkv"], prepared["wo3"], prepared["w13"],
      prepared["w2"], prepared["alphas"])
    return out_flat.reshape(B, T, D)


def make_params(key):
    """Deterministic parameter init. Linear weights ~ N(0, 1/fan_in); the nGPT
    scale vectors follow the module's __init__ (init_scaling * ones)."""
    keys = jax.random.split(key, 7)

    def init_w(k, shape):
        return jax.random.normal(k, shape, jnp.float32) / math.sqrt(shape[0])

    return dict(
        wq=init_w(keys[0], (D_MODEL, D_MODEL)),
        wk=init_w(keys[1], (D_MODEL, D_MODEL)),
        wv=init_w(keys[2], (D_MODEL, D_MODEL)),
        wo=init_w(keys[3], (D_MODEL, D_MODEL)),
        w1=init_w(keys[4], (D_MODEL, HIDDEN)),
        w3=init_w(keys[5], (D_MODEL, HIDDEN)),
        w2=init_w(keys[6], (HIDDEN, D_MODEL)),
        sq=jnp.full((1, D_MODEL), SQ_INIT_SCALING, jnp.float32),
        sk=jnp.full((1, D_MODEL), SK_INIT_SCALING, jnp.float32),
        su=jnp.full((1, HIDDEN), SU_INIT_SCALING, jnp.float32),
        sv=jnp.full((1, HIDDEN), SV_INIT_SCALING, jnp.float32),
        attn_alpha=jnp.full((1, D_MODEL), ATTN_ALPHA_INIT_SCALING, jnp.float32),
        mlp_alpha=jnp.full((1, D_MODEL), MLP_ALPHA_INIT_SCALING, jnp.float32),
    )


def reference_block(x, params):
    """Pure numpy (float64) reference of the original (unfused) module math."""
    xp = np.asarray(x, np.float64)
    p = {k: np.asarray(v, np.float64) for k, v in params.items()}

    def l2n(a):
        return a / np.sqrt(np.sum(a * a, axis=-1, keepdims=True))

    B, T, D = xp.shape
    out = np.zeros_like(xp)
    mask = np.tril(np.ones((T, T), dtype=bool))
    for b in range(B):
        xb = xp[b]
        q = (xb @ p["wq"]) * (p["sq"][0] * (SQ_INIT_VALUE / SQ_INIT_SCALING))
        k = (xb @ p["wk"]) * (p["sk"][0] * (SK_INIT_VALUE / SK_INIT_SCALING))
        v = xb @ p["wv"]
        att = np.zeros((T, D))
        for h in range(N_HEADS):
            sl = slice(h * HEAD_DIM, (h + 1) * HEAD_DIM)
            s = (q[:, sl] @ k[:, sl].T) * (HEAD_DIM ** 0.5)
            s = np.where(mask, s, -np.inf)
            s = s - s.max(-1, keepdims=True)
            pr = np.exp(s)
            pr = pr / pr.sum(-1, keepdims=True)
            att[:, sl] = pr @ v[:, sl]
        attn_out = att @ p["wo"]
        a_attn = np.abs(p["attn_alpha"][0] * (ATTN_ALPHA_INIT_VALUE / ATTN_ALPHA_INIT_SCALING))
        h1 = l2n(xb + a_attn * (l2n(attn_out) - xb))

        su = p["su"][0] * (SU_INIT_VALUE / SU_INIT_SCALING)
        sv = p["sv"][0] * (SV_INIT_VALUE / SV_INIT_SCALING)
        g = (h1 @ p["w1"]) * su * math.sqrt(D_MODEL)
        gate = g / (1.0 + np.exp(-g))
        up = (h1 @ p["w3"]) * sv
        ff = (gate * up) @ p["w2"]
        a_mlp = np.abs(p["mlp_alpha"][0] * (MLP_ALPHA_INIT_VALUE / MLP_ALPHA_INIT_SCALING))
        out[b] = l2n(h1 + a_mlp * (l2n(ff) - h1))
    return out


if __name__ == "__main__":
    key = jax.random.PRNGKey(0)
    kx, kp = jax.random.split(key)
    x = jax.random.normal(kx, (BATCH, SEQ, D_MODEL), jnp.float32)
    params = make_params(kp)
    prepared = prepare_params(params)

    out = normalized_transformer_block(x, prepared)
    jax.block_until_ready(out)

    ref = reference_block(x, params)
    np.testing.assert_allclose(np.asarray(out), ref, rtol=5e-2, atol=5e-2)
    print("KERNEL_OK")
</pallas_src>

<mosaic_0001>
module attributes {stable_mosaic.version = 11 : i64} {
  func.func @ngpt_block_kernel(%arg0: i32, %arg1: memref<8x32xf32, #tpu.memory_space<vmem>>, %arg2: memref<32x96xbf16, #tpu.memory_space<vmem>>, %arg3: memref<4x8x32xbf16, #tpu.memory_space<vmem>>, %arg4: memref<32x128xbf16, #tpu.memory_space<vmem>>, %arg5: memref<64x32xbf16, #tpu.memory_space<vmem>>, %arg6: memref<2x32xf32, #tpu.memory_space<vmem>>, %arg7: memref<8x32xf32, #tpu.memory_space<vmem>>) attributes {dimension_semantics = [#tpu.dimension_semantics<parallel>], iteration_bounds = array<i64: 2>, scalar_prefetch = 0 : i64, scratch_operands = 0 : i64, tpu.core_type = #tpu.core_type<tc>, window_params = [{transform_indices = @transform_0, window_bounds = array<i64: 8, 32>}, {pipeline_mode = #tpu.pipeline_mode<synchronous>, transform_indices = @transform_1, window_bounds = array<i64: 32, 96>}, {pipeline_mode = #tpu.pipeline_mode<synchronous>, transform_indices = @transform_2, window_bounds = array<i64: 4, 8, 32>}, {pipeline_mode = #tpu.pipeline_mode<synchronous>, transform_indices = @transform_3, window_bounds = array<i64: 32, 128>}, {pipeline_mode = #tpu.pipeline_mode<synchronous>, transform_indices = @transform_4, window_bounds = array<i64: 64, 32>}, {pipeline_mode = #tpu.pipeline_mode<synchronous>, transform_indices = @transform_5, window_bounds = array<i64: 2, 32>}, {transform_indices = @transform_6, window_bounds = array<i64: 8, 32>}]} {
    %c0 = arith.constant 0 : index
    %c0_0 = arith.constant 0 : index
    %0 = vector.load %arg1[%c0, %c0_0] : memref<8x32xf32, #tpu.memory_space<vmem>>, vector<8x32xf32>
    %1 = arith.truncf %0 : vector<8x32xf32> to vector<8x32xbf16>
    %c0_1 = arith.constant 0 : index
    %c0_2 = arith.constant 0 : index
    %2 = vector.load %arg2[%c0_1, %c0_2] : memref<32x96xbf16, #tpu.memory_space<vmem>>, vector<32x96xbf16>
    %cst = arith.constant dense<0.000000e+00> : vector<8x96xf32>
    %3 = tpu.matmul %1, %2, %cst {dimension_numbers = #tpu.dot_dimension_numbers<[1], [0], [0], [1], [0, 0, 1, 1], [], []>} : vector<8x32xbf16>, vector<32x96xbf16>, vector<8x96xf32> -> vector<8x96xf32>
    %4 = vector.extract_strided_slice %3 {offsets = [0, 0], sizes = [8, 32], strides = [1, 1]} : vector<8x96xf32> to vector<8x32xf32>
    %5 = vector.extract_strided_slice %3 {offsets = [0, 32], sizes = [8, 32], strides = [1, 1]} : vector<8x96xf32> to vector<8x32xf32>
    %6 = vector.extract_strided_slice %3 {offsets = [0, 64], sizes = [8, 32], strides = [1, 1]} : vector<8x96xf32> to vector<8x32xf32>
    %7 = vector.extract_strided_slice %4 {offsets = [0, 0], sizes = [8, 8], strides = [1, 1]} : vector<8x32xf32> to vector<8x8xf32>
    %8 = vector.extract_strided_slice %4 {offsets = [0, 8], sizes = [8, 8], strides = [1, 1]} : vector<8x32xf32> to vector<8x8xf32>
    %9 = vector.extract_strided_slice %4 {offsets = [0, 16], sizes = [8, 8], strides = [1, 1]} : vector<8x32xf32> to vector<8x8xf32>
    %10 = vector.extract_strided_slice %4 {offsets = [0, 24], sizes = [8, 8], strides = [1, 1]} : vector<8x32xf32> to vector<8x8xf32>
    %11 = vector.shape_cast %7 : vector<8x8xf32> to vector<1x8x8xf32>
    %12 = vector.shape_cast %8 : vector<8x8xf32> to vector<1x8x8xf32>
    %13 = vector.shape_cast %9 : vector<8x8xf32> to vector<1x8x8xf32>
    %14 = vector.shape_cast %10 : vector<8x8xf32> to vector<1x8x8xf32>
    %15 = tpu.concatenate %11, %12, %13, %14 in 0 : vector<1x8x8xf32>, vector<1x8x8xf32>, vector<1x8x8xf32>, vector<1x8x8xf32> -> vector<4x8x8xf32>
    %16 = arith.truncf %15 : vector<4x8x8xf32> to vector<4x8x8xbf16>
    %17 = vector.extract_strided_slice %5 {offsets = [0, 0], sizes = [8, 8], strides = [1, 1]} : vector<8x32xf32> to vector<8x8xf32>
    %18 = vector.extract_strided_slice %5 {offsets = [0, 8], sizes = [8, 8], strides = [1, 1]} : vector<8x32xf32> to vector<8x8xf32>
    %19 = vector.extract_strided_slice %5 {offsets = [0, 16], sizes = [8, 8], strides = [1, 1]} : vector<8x32xf32> to vector<8x8xf32>
    %20 = vector.extract_strided_slice %5 {offsets = [0, 24], sizes = [8, 8], strides = [1, 1]} : vector<8x32xf32> to vector<8x8xf32>
    %21 = vector.shape_cast %17 : vector<8x8xf32> to vector<1x8x8xf32>
    %22 = vector.shape_cast %18 : vector<8x8xf32> to vector<1x8x8xf32>
    %23 = vector.shape_cast %19 : vector<8x8xf32> to vector<1x8x8xf32>
    %24 = vector.shape_cast %20 : vector<8x8xf32> to vector<1x8x8xf32>
    %25 = tpu.concatenate %21, %22, %23, %24 in 0 : vector<1x8x8xf32>, vector<1x8x8xf32>, vector<1x8x8xf32>, vector<1x8x8xf32> -> vector<4x8x8xf32>
    %26 = arith.truncf %25 : vector<4x8x8xf32> to vector<4x8x8xbf16>
    %27 = vector.extract_strided_slice %6 {offsets = [0, 0], sizes = [8, 8], strides = [1, 1]} : vector<8x32xf32> to vector<8x8xf32>
    %28 = vector.extract_strided_slice %6 {offsets = [0, 8], sizes = [8, 8], strides = [1, 1]} : vector<8x32xf32> to vector<8x8xf32>
    %29 = vector.extract_strided_slice %6 {offsets = [0, 16], sizes = [8, 8], strides = [1, 1]} : vector<8x32xf32> to vector<8x8xf32>
    %30 = vector.extract_strided_slice %6 {offsets = [0, 24], sizes = [8, 8], strides = [1, 1]} : vector<8x32xf32> to vector<8x8xf32>
    %31 = vector.shape_cast %27 : vector<8x8xf32> to vector<1x8x8xf32>
    %32 = vector.shape_cast %28 : vector<8x8xf32> to vector<1x8x8xf32>
    %33 = vector.shape_cast %29 : vector<8x8xf32> to vector<1x8x8xf32>
    %34 = vector.shape_cast %30 : vector<8x8xf32> to vector<1x8x8xf32>
    %35 = tpu.concatenate %31, %32, %33, %34 in 0 : vector<1x8x8xf32>, vector<1x8x8xf32>, vector<1x8x8xf32>, vector<1x8x8xf32> -> vector<4x8x8xf32>
    %36 = arith.truncf %35 : vector<4x8x8xf32> to vector<4x8x8xbf16>
    %37 = tpu.iota {dimensions = array<i32: 0>} : vector<8x8xi32>
    %38 = tpu.iota {dimensions = array<i32: 1>} : vector<8x8xi32>
    %39 = arith.cmpi sle, %38, %37 : vector<8x8xi32>
    %cst_3 = arith.constant 0.000000e+00 : f32
    %cst_4 = arith.constant -1.000000e+30 : f32
    %40 = vector.broadcast %cst_3 : f32 to vector<8x8xf32>
    %41 = vector.broadcast %cst_4 : f32 to vector<8x8xf32>
    %42 = arith.select %39, %40, %41 : vector<8x8xi1>, vector<8x8xf32>
    "tpu.trace_start"() <{level = 10 : i32, message = "hqd,hkd->hqk"}> : () -> ()
    %cst_5 = arith.constant dense<0.000000e+00> : vector<4x8x8xf32>
    %43 = tpu.matmul %16, %26, %cst_5 {dimension_numbers = #tpu.dot_dimension_numbers<[2], [2], [1], [1], [0, 0, 0, 1, 1, 1], [0], [0]>} : vector<4x8x8xbf16>, vector<4x8x8xbf16>, vector<4x8x8xf32> -> vector<4x8x8xf32>
    "tpu.trace_stop"() : () -> ()
    %44 = vector.shape_cast %42 : vector<8x8xf32> to vector<1x8x8xf32>
    %45 = vector.broadcast %44 : vector<1x8x8xf32> to vector<4x8x8xf32>
    %46 = arith.addf %43, %45 : vector<4x8x8xf32>
    %cst_6 = arith.constant dense<0xFF800000> : vector<4x8xf32>
    %47 = vector.multi_reduction <maximumf>, %46, %cst_6 [2] : vector<4x8x8xf32> to vector<4x8xf32>
    %48 = vector.shape_cast %47 : vector<4x8xf32> to vector<4x8x1xf32>
    %49 = vector.broadcast %48 : vector<4x8x1xf32> to vector<4x8x8xf32>
    %50 = arith.subf %46, %49 : vector<4x8x8xf32>
    %51 = math.exp %50 : vector<4x8x8xf32>
    %cst_7 = arith.constant dense<0.000000e+00> : vector<4x8xf32>
    %52 = vector.multi_reduction <add>, %51, %cst_7 [2] : vector<4x8x8xf32> to vector<4x8xf32>
    %53 = vector.shape_cast %52 : vector<4x8xf32> to vector<4x8x1xf32>
    %54 = tpu.reciprocal %53 {approx = true} : vector<4x8x1xf32> -> vector<4x8x1xf32>
    %55 = vector.broadcast %54 : vector<4x8x1xf32> to vector<4x8x8xf32>
    %56 = arith.mulf %51, %55 : vector<4x8x8xf32>
    %57 = arith.truncf %56 : vector<4x8x8xf32> to vector<4x8x8xbf16>
    "tpu.trace_start"() <{level = 10 : i32, message = "hqk,hkd->hqd"}> : () -> ()
    %cst_8 = arith.constant dense<0.000000e+00> : vector<4x8x8xf32>
    %58 = tpu.matmul %57, %36, %cst_8 {dimension_numbers = #tpu.dot_dimension_numbers<[2], [1], [1], [2], [0, 0, 0, 1, 1, 2], [0], [0]>} : vector<4x8x8xbf16>, vector<4x8x8xbf16>, vector<4x8x8xf32> -> vector<4x8x8xf32>
    "tpu.trace_stop"() : () -> ()
    %59 = arith.truncf %58 : vector<4x8x8xf32> to vector<4x8x8xbf16>
    %c0_9 = arith.constant 0 : index
    %c0_10 = arith.constant 0 : index
    %c0_11 = arith.constant 0 : index
    %60 = vector.load %arg3[%c0_9, %c0_10, %c0_11] : memref<4x8x32xbf16, #tpu.memory_space<vmem>>, vector<4x8x32xbf16>
    "tpu.trace_start"() <{level = 10 : i32, message = "hqd,hdn->hqn"}> : () -> ()
    %cst_12 = arith.constant dense<0.000000e+00> : vector<4x8x32xf32>
    %61 = tpu.matmul %59, %60, %cst_12 {dimension_numbers = #tpu.dot_dimension_numbers<[2], [1], [1], [2], [0, 0, 0, 1, 1, 2], [0], [0]>} : vector<4x8x8xbf16>, vector<4x8x32xbf16>, vector<4x8x32xf32> -> vector<4x8x32xf32>
    "tpu.trace_stop"() : () -> ()
    %cst_13 = arith.constant dense<0.000000e+00> : vector<8x32xf32>
    %62 = vector.multi_reduction <add>, %61, %cst_13 [0] : vector<4x8x32xf32> to vector<8x32xf32>
    %c0_14 = arith.constant 0 : index
    %c0_15 = arith.constant 0 : index
    %63 = vector.load %arg6[%c0_14, %c0_15] : memref<2x32xf32, #tpu.memory_space<vmem>>, vector<2x32xf32>
    %64 = vector.extract_strided_slice %63 {offsets = [0, 0], sizes = [1, 32], strides = [1, 1]} : vector<2x32xf32> to vector<1x32xf32>
    %65 = math.absf %64 : vector<1x32xf32>
    %66 = arith.mulf %62, %62 : vector<8x32xf32>
    %cst_16 = arith.constant dense<0.000000e+00> : vector<8xf32>
    %67 = vector.multi_reduction <add>, %66, %cst_16 [1] : vector<8x32xf32> to vector<8xf32>
    %68 = vector.shape_cast %67 : vector<8xf32> to vector<8x1xf32>
    %69 = math.rsqrt %68 : vector<8x1xf32>
    %70 = vector.broadcast %69 : vector<8x1xf32> to vector<8x32xf32>
    %71 = arith.mulf %62, %70 : vector<8x32xf32>
    %72 = arith.subf %71, %0 : vector<8x32xf32>
    %73 = vector.broadcast %65 : vector<1x32xf32> to vector<8x32xf32>
    %74 = arith.mulf %73, %72 : vector<8x32xf32>
    %75 = arith.addf %0, %74 : vector<8x32xf32>
    %76 = arith.mulf %75, %75 : vector<8x32xf32>
    %cst_17 = arith.constant dense<0.000000e+00> : vector<8xf32>
    %77 = vector.multi_reduction <add>, %76, %cst_17 [1] : vector<8x32xf32> to vector<8xf32>
    %78 = vector.shape_cast %77 : vector<8xf32> to vector<8x1xf32>
    %79 = math.rsqrt %78 : vector<8x1xf32>
    %80 = vector.broadcast %79 : vector<8x1xf32> to vector<8x32xf32>
    %81 = arith.mulf %75, %80 : vector<8x32xf32>
    %82 = arith.truncf %81 : vector<8x32xf32> to vector<8x32xbf16>
    %c0_18 = arith.constant 0 : index
    %c0_19 = arith.constant 0 : index
    %83 = vector.load %arg4[%c0_18, %c0_19] : memref<32x128xbf16, #tpu.memory_space<vmem>>, vector<32x128xbf16>
    %cst_20 = arith.constant dense<0.000000e+00> : vector<8x128xf32>
    %84 = tpu.matmul %82, %83, %cst_20 {dimension_numbers = #tpu.dot_dimension_numbers<[1], [0], [0], [1], [0, 0, 1, 1], [], []>} : vector<8x32xbf16>, vector<32x128xbf16>, vector<8x128xf32> -> vector<8x128xf32>
    %85 = vector.extract_strided_slice %84 {offsets = [0, 0], sizes = [8, 64], strides = [1, 1]} : vector<8x128xf32> to vector<8x64xf32>
    %86 = arith.negf %85 : vector<8x64xf32>
    %87 = math.exp %86 : vector<8x64xf32>
    %cst_21 = arith.constant 1.000000e+00 : f32
    %88 = vector.broadcast %cst_21 : f32 to vector<8x64xf32>
    %89 = arith.addf %88, %87 : vector<8x64xf32>
    %90 = arith.divf %88, %89 : vector<8x64xf32>
    %91 = arith.mulf %85, %90 : vector<8x64xf32>
    %92 = vector.extract_strided_slice %84 {offsets = [0, 64], sizes = [8, 64], strides = [1, 1]} : vector<8x128xf32> to vector<8x64xf32>
    %93 = arith.mulf %91, %92 : vector<8x64xf32>
    %94 = arith.truncf %93 : vector<8x64xf32> to vector<8x64xbf16>
    %c0_22 = arith.constant 0 : index
    %c0_23 = arith.constant 0 : index
    %95 = vector.load %arg5[%c0_22, %c0_23] : memref<64x32xbf16, #tpu.memory_space<vmem>>, vector<64x32xbf16>
    %cst_24 = arith.constant dense<0.000000e+00> : vector<8x32xf32>
    %96 = tpu.matmul %94, %95, %cst_24 {dimension_numbers = #tpu.dot_dimension_numbers<[1], [0], [0], [1], [0, 0, 1, 1], [], []>} : vector<8x64xbf16>, vector<64x32xbf16>, vector<8x32xf32> -> vector<8x32xf32>
    %97 = vector.extract_strided_slice %63 {offsets = [1, 0], sizes = [1, 32], strides = [1, 1]} : vector<2x32xf32> to vector<1x32xf32>
    %98 = math.absf %97 : vector<1x32xf32>
    %99 = arith.mulf %96, %96 : vector<8x32xf32>
    %cst_25 = arith.constant dense<0.000000e+00> : vector<8xf32>
    %100 = vector.multi_reduction <add>, %99, %cst_25 [1] : vector<8x32xf32> to vector<8xf32>
    %101 = vector.shape_cast %100 : vector<8xf32> to vector<8x1xf32>
    %102 = math.rsqrt %101 : vector<8x1xf32>
    %103 = vector.broadcast %102 : vector<8x1xf32> to vector<8x32xf32>
    %104 = arith.mulf %96, %103 : vector<8x32xf32>
    %105 = arith.subf %104, %81 : vector<8x32xf32>
    %106 = vector.broadcast %98 : vector<1x32xf32> to vector<8x32xf32>
    %107 = arith.mulf %106, %105 : vector<8x32xf32>
    %108 = arith.addf %81, %107 : vector<8x32xf32>
    %109 = arith.mulf %108, %108 : vector<8x32xf32>
    %cst_26 = arith.constant dense<0.000000e+00> : vector<8xf32>
    %110 = vector.multi_reduction <add>, %109, %cst_26 [1] : vector<8x32xf32> to vector<8xf32>
    %111 = vector.shape_cast %110 : vector<8xf32> to vector<8x1xf32>
    %112 = math.rsqrt %111 : vector<8x1xf32>
    %113 = vector.broadcast %112 : vector<8x1xf32> to vector<8x32xf32>
    %114 = arith.mulf %108, %113 : vector<8x32xf32>
    %c0_27 = arith.constant 0 : index
    %c0_28 = arith.constant 0 : index
    %115 = vector.load %arg7[%c0_27, %c0_28] : memref<8x32xf32, #tpu.memory_space<vmem>>, vector<8x32xf32>
    tpu.vector_store %arg7[%c0_27, %c0_28], %114 {strides = array<i32>} : memref<8x32xf32, #tpu.memory_space<vmem>>, vector<8x32xf32>,
    return
  }
  func.func @transform_0(%arg0: i32) -> (i32, i32) {
    %c0_i32 = arith.constant 0 : i32
    %c0_i32_0 = arith.constant 0 : i32
    return %arg0, %c0_i32 : i32, i32
  }
  func.func @transform_1(%arg0: i32) -> (i32, i32) {
    %c0_i32 = arith.constant 0 : i32
    %c0_i32_0 = arith.constant 0 : i32
    %c0_i32_1 = arith.constant 0 : i32
    return %c0_i32, %c0_i32_0 : i32, i32
  }
  func.func @transform_2(%arg0: i32) -> (i32, i32, i32) {
    %c0_i32 = arith.constant 0 : i32
    %c0_i32_0 = arith.constant 0 : i32
    %c0_i32_1 = arith.constant 0 : i32
    %c0_i32_2 = arith.constant 0 : i32
    return %c0_i32, %c0_i32_0, %c0_i32_1 : i32, i32, i32
  }
  func.func @transform_3(%arg0: i32) -> (i32, i32) {
    %c0_i32 = arith.constant 0 : i32
    %c0_i32_0 = arith.constant 0 : i32
    %c0_i32_1 = arith.constant 0 : i32
    return %c0_i32, %c0_i32_0 : i32, i32
  }
  func.func @transform_4(%arg0: i32) -> (i32, i32) {
    %c0_i32 = arith.constant 0 : i32
    %c0_i32_0 = arith.constant 0 : i32
    %c0_i32_1 = arith.constant 0 : i32
    return %c0_i32, %c0_i32_0 : i32, i32
  }
  func.func @transform_5(%arg0: i32) -> (i32, i32) {
    %c0_i32 = arith.constant 0 : i32
    %c0_i32_0 = arith.constant 0 : i32
    %c0_i32_1 = arith.constant 0 : i32
    return %c0_i32, %c0_i32_0 : i32, i32
  }
  func.func @transform_6(%arg0: i32) -> (i32, i32) {
    %c0_i32 = arith.constant 0 : i32
    %c0_i32_0 = arith.constant 0 : i32
    return %arg0, %c0_i32 : i32, i32
  }
}

</mosaic_0001>

<llo_original>
// kernel: tpu_custom_call.1
$region0: #{tpu_custom_call.1}
  #allocation0 [shape = 'u32[]', space=smem, size = 0x4, offset = 0x4, fixed_abs, tag = 'smem constant byte address 0x4 - core index']
  #allocation1 [shape = 'u32[144,128]{1,0:T(1,128)}', space=vmem, size = 0x12000, scoped, tag = 'internal scratch']
  %s0 = inlined_call_operand.vmem [shape: f32[16,32], index: 0, kind: input, shape index: {}]
  %s1 = inlined_call_operand.vmem [shape: bf16[32,96], index: 1, kind: input, shape index: {}]
  %s2 = inlined_call_operand.vmem [shape: bf16[4,8,32], index: 2, kind: input, shape index: {}]
  %s3 = inlined_call_operand.hbm [shape: bf16[32,128], index: 3, kind: input, shape index: {}]
  %s4 = inlined_call_operand.vmem [shape: bf16[64,32], index: 4, kind: input, shape index: {}]
  %s5 = inlined_call_operand.vmem [shape: f32[2,32], index: 5, kind: input, shape index: {}]
  %s6 = inlined_call_operand.hbm [shape: f32[16,32], index: 6, kind: output, shape index: {}]
  %s7 = sld [smem:[#allocation0]]
  $region61: #{tpu_custom_call.1} parent=0
    _
  %s9 = ssub.s32 1, %s7
  %s10 = scalar_select 0, %s9, %s7
  $region1: #{tpu_custom_call.1} parent=0
    #allocation2 [shape = 'u8[8192]{0}', space=vmem, size = 0x2000, scoped, tag = 'input window, operand 3, single buffered']
    #allocation3 [shape = 's32[2]{0}', space=sflag, size = 0x8, scoped, tag = 'scoped memory for tpu_custom_call.1']
    #allocation4 [shape = 's32[2]{0}', space=sflag, size = 0x8, scoped, tag = 'scoped memory for tpu_custom_call.1']
    #allocation5 [shape = 'u8[8192]{0}', space=vmem, size = 0x2000, scoped, tag = 'output window, operand 0']
    %11 = vsyncpa [#allocation3], 0
    %12 = vsyncpa [#allocation4], 0
    %s13 = scalar_lea.sflag [#allocation4], 1
    %14 = vsyncpa %s13, 0
    loop: start=0, step=1, limit=4
    $region2: #{tpu_custom_call.1} parent=1 // loop_pre_header
      _
    $region3: #{tpu_custom_call.1} parent=1 // loop_header
      %s16 = sphi 0, %s20
      %p17 = scmp.ge.s32.totalorder %s16, 4
      %s26 = sphi 0, %s28
      %s29 = sphi 0, %s26
      %s30 = sphi 0, %s29
      %s46 = sphi 0, %s30
      %s50 = sphi 0, %s50
      %s52 = sphi 0, %s50
      %s53 = sphi 0, %s52
      %s67 = sphi 0, %s53
      %s71 = sphi 0, %s71
      %s73 = sphi 0, %s71
      %s74 = sphi 0, %s73
      %s88 = sphi 0, %s74
      %s92 = sphi 0, %s92
      %s94 = sphi 0, %s92
      %s95 = sphi 0, %s94
      %s109 = sphi 0, %s95
      %s113 = sphi 0, %s113
      %s115 = sphi 0, %s113
      %s116 = sphi 0, %s115
      %s130 = sphi 0, %s116
      %s134 = sphi 0, %s134
      %s136 = sphi 0, %s134
      %s137 = sphi 0, %s136
      %s151 = sphi 0, %s137
      %s157 = sphi 0, %s159
      %s160 = sphi 0, %s157
      %s161 = sphi 0, %s160
      %s177 = sphi 0, %s161
    $region4: #{tpu_custom_call.1} parent=1 // loop_header_branch
      %19 = sbr.rel (%p17) target = $region8
    $region5: #{tpu_custom_call.1} parent=1 // loop_body
      %s21 = ssub.s32 %s16, 1
      %s22 = ssub.s32 %s16, 2
      %s23 = sadd.s32 %s16, 1
      %s24 = ssub.s32 %s16, %s23
      %p25 = scmp.eq.s32.totalorder %s24, 0
      %s27 = sadd.s32 %s26, 1
      %s28 = scalar_select %p25, %s26, %s27
      %p31 = pneg %p25
      %p32 = scmp.eq.s32.totalorder %s16, 1
      %p33 = por %p31, %p32
      %p34 = scmp.ne.s32.totalorder %s26, %s29
      %p35 = scmp.eq.s32.totalorder %s16, 0
      %p36 = por %p34, %p35
      %p37 = scmp.ne.s32.totalorder %s26, %s29
      %p38 = scmp.eq.s32.totalorder %s21, 1
      %p39 = por %p37, %p38
      %p40 = scmp.ne.s32.totalorder %s29, %s30
      %p41 = scmp.eq.s32.totalorder %s21, 0
      %p42 = por %p40, %p41
      %p43 = scmp.ne.s32.totalorder %s29, %s30
      %p44 = scmp.eq.s32.totalorder %s22, 1
      %p45 = por %p43, %p44
      %p47 = scmp.ne.s32.totalorder %s30, %s46
      %p48 = scmp.eq.s32.totalorder %s22, 0
      %p49 = por %p47, %p48
      %s51 = sadd.s32 %s50, 1
      %p54 = scmp.eq.s32.totalorder %s16, 1
      %p55 = scmp.ne.s32.totalorder %s50, %s52
      %p56 = scmp.eq.s32.totalorder %s16, 0
      %p57 = por %p55, %p56
      %p58 = scmp.ne.s32.totalorder %s50, %s52
      %p59 = scmp.eq.s32.totalorder %s21, 1
      %p60 = por %p58, %p59
      %p61 = scmp.ne.s32.totalorder %s52, %s53
      %p62 = scmp.eq.s32.totalorder %s21, 0
      %p63 = por %p61, %p62
      %p64 = scmp.ne.s32.totalorder %s52, %s53
      %p65 = scmp.eq.s32.totalorder %s22, 1
      %p66 = por %p64, %p65
      %p68 = scmp.ne.s32.totalorder %s53, %s67
      %p69 = scmp.eq.s32.totalorder %s22, 0
      %p70 = por %p68, %p69
      %s72 = sadd.s32 %s71, 1
      %p75 = scmp.eq.s32.totalorder %s16, 1
      %p76 = scmp.ne.s32.totalorder %s71, %s73
      %p77 = scmp.eq.s32.totalorder %s16, 0
      %p78 = por %p76, %p77
      %p79 = scmp.ne.s32.totalorder %s71, %s73
      %p80 = scmp.eq.s32.totalorder %s21, 1
      %p81 = por %p79, %p80
      %p82 = scmp.ne.s32.totalorder %s73, %s74
      %p83 = scmp.eq.s32.totalorder %s21, 0
      %p84 = por %p82, %p83
      %p85 = scmp.ne.s32.totalorder %s73, %s74
      %p86 = scmp.eq.s32.totalorder %s22, 1
      %p87 = por %p85, %p86
      %p89 = scmp.ne.s32.totalorder %s74, %s88
      %p90 = scmp.eq.s32.totalorder %s22, 0
      %p91 = por %p89, %p90
      %s93 = sadd.s32 %s92, 1
      %p96 = scmp.eq.s32.totalorder %s16, 1
      %p97 = scmp.ne.s32.totalorder %s92, %s94
      %p98 = scmp.eq.s32.totalorder %s16, 0
      %p99 = por %p97, %p98
      %p100 = scmp.ne.s32.totalorder %s92, %s94
      %p101 = scmp.eq.s32.totalorder %s21, 1
      %p102 = por %p100, %p101
      %p103 = scmp.ne.s32.totalorder %s94, %s95
      %p104 = scmp.eq.s32.totalorder %s21, 0
      %p105 = por %p103, %p104
      %p106 = scmp.ne.s32.totalorder %s94, %s95
      %p107 = scmp.eq.s32.totalorder %s22, 1
      %p108 = por %p106, %p107
      %p110 = scmp.ne.s32.totalorder %s95, %s109
      %p111 = scmp.eq.s32.totalorder %s22, 0
      %p112 = por %p110, %p111
      %s114 = sadd.s32 %s113, 1
      %p117 = scmp.eq.s32.totalorder %s16, 1
      %p118 = scmp.ne.s32.totalorder %s113, %s115
      %p119 = scmp.eq.s32.totalorder %s16, 0
      %p120 = por %p118, %p119
      %p121 = scmp.ne.s32.totalorder %s113, %s115
      %p122 = scmp.eq.s32.totalorder %s21, 1
      %p123 = por %p121, %p122
      %p124 = scmp.ne.s32.totalorder %s115, %s116
      %p125 = scmp.eq.s32.totalorder %s21, 0
      %p126 = por %p124, %p125
      %p127 = scmp.ne.s32.totalorder %s115, %s116
      %p128 = scmp.eq.s32.totalorder %s22, 1
      %p129 = por %p127, %p128
      %p131 = scmp.ne.s32.totalorder %s116, %s130
      %p132 = scmp.eq.s32.totalorder %s22, 0
      %p133 = por %p131, %p132
      %s135 = sadd.s32 %s134, 1
      %p138 = scmp.eq.s32.totalorder %s16, 1
      %p139 = scmp.ne.s32.totalorder %s134, %s136
      %p140 = scmp.eq.s32.totalorder %s16, 0
      %p141 = por %p139, %p140
      %p142 = scmp.ne.s32.totalorder %s134, %s136
      %p143 = scmp.eq.s32.totalorder %s21, 1
      %p144 = por %p142, %p143
      %p145 = scmp.ne.s32.totalorder %s136, %s137
      %p146 = scmp.eq.s32.totalorder %s21, 0
      %p147 = por %p145, %p146
      %p148 = scmp.ne.s32.totalorder %s136, %s137
      %p149 = scmp.eq.s32.totalorder %s22, 1
      %p150 = por %p148, %p149
      %p152 = scmp.ne.s32.totalorder %s137, %s151
      %p153 = scmp.eq.s32.totalorder %s22, 0
      %p154 = por %p152, %p153
      %s155 = ssub.s32 %s16, %s23
      %p156 = scmp.eq.s32.totalorder %s155, 0
      %s158 = sadd.s32 %s157, 1
      %s159 = scalar_select %p156, %s157, %s158
      %p162 = pneg %p156
      %p163 = scmp.eq.s32.totalorder %s16, 1
      %p164 = por %p162, %p163
      %p165 = scmp.ne.s32.totalorder %s157, %s160
      %p166 = scmp.eq.s32.totalorder %s16, 0
      %p167 = por %p165, %p166
      %p168 = scmp.ne.s32.totalorder %s157, %s160
      %p169 = scmp.eq.s32.totalorder %s21, 1
      %p170 = por %p168, %p169
      %p171 = scmp.ne.s32.totalorder %s160, %s161
      %p172 = scmp.eq.s32.totalorder %s21, 0
      %p173 = por %p171, %p172
      %p174 = scmp.ne.s32.totalorder %s160, %s161
      %p175 = scmp.eq.s32.totalorder %s22, 1
      %p176 = por %p174, %p175
      %p178 = scmp.ne.s32.totalorder %s161, %s177
      %p179 = scmp.eq.s32.totalorder %s22, 0
      %p180 = por %p178, %p179
      %p181 = scmp.le.s32.totalorder 1, %s16
      %p182 = scmp.lt.s32.totalorder %s16, 3
      %p183 = pnand %p181, %p182
      %p184 = pneg %p183
      // Predicated region
      $region9: #{tpu_custom_call.1} parent=5 // pred_check
        _
      $region10: #{tpu_custom_call.1} parent=5 // pred_check_branch
        %186 = sbr.rel (%p183) target = $region12
      $region11: #{tpu_custom_call.1} parent=5 // pred_region
        %s187 = ssub.s32 %s16, 1
        // Predicated region
        $region13: #{tpu_custom_call.1} parent=11 // pred_check
          %p188 = pneg %p63
        $region14: #{tpu_custom_call.1} parent=11 // pred_check_branch
          %190 = sbr.rel (%p188) target = $region16
        $region15: #{tpu_custom_call.1} parent=11 // pred_region
          _
        $region16: #{tpu_custom_call.1} parent=11 // pred_fallthru
          _
        // Predicated region
        $region17: #{tpu_custom_call.1} parent=11 // pred_check
          %p191 = pneg %p84
        $region18: #{tpu_custom_call.1} parent=11 // pred_check_branch
          %193 = sbr.rel (%p191) target = $region20
        $region19: #{tpu_custom_call.1} parent=11 // pred_region
          _
        $region20: #{tpu_custom_call.1} parent=11 // pred_fallthru
          _
        // Predicated region
        $region21: #{tpu_custom_call.1} parent=11 // pred_check
          %p194 = pneg %p105
        $region22: #{tpu_custom_call.1} parent=11 // pred_check_branch
          %196 = sbr.rel (%p194) target = $region24
        $region23: #{tpu_custom_call.1} parent=11 // pred_region
          %s198 = ssub.s32 256, 256
          %199 = vsyncadd [#allocation3], %s198
          %s200 = sshll.u32 [#allocation2], 4
          %s201 = int_to_ptr.vmem [resolvable:$true] %s200
          %206 = dma.hbm_to_vmem [thread:$0]  %s3, 256, %s201, [#allocation3], 64, 64, 4
        $region24: #{tpu_custom_call.1} parent=11 // pred_fallthru
          _
        // Predicated region
        $region25: #{tpu_custom_call.1} parent=11 // pred_check
          %p207 = pneg %p126
        $region26: #{tpu_custom_call.1} parent=11 // pred_check_branch
          %209 = sbr.rel (%p207) target = $region28
        $region27: #{tpu_custom_call.1} parent=11 // pred_region
          _
        $region28: #{tpu_custom_call.1} parent=11 // pred_fallthru
          _
        // Predicated region
        $region29: #{tpu_custom_call.1} parent=11 // pred_check
          %p210 = pneg %p147
        $region30: #{tpu_custom_call.1} parent=11 // pred_check_branch
          %212 = sbr.rel (%p210) target = $region32
        $region31: #{tpu_custom_call.1} parent=11 // pred_region
          _
        $region32: #{tpu_custom_call.1} parent=11 // pred_fallthru
          _
      $region12: #{tpu_custom_call.1} parent=5 // pred_fallthru
        _
      %p213 = scmp.lt.s32.totalorder %s16, 2
      // Predicated region
      $region33: #{tpu_custom_call.1} parent=5 // pred_check
        %p214 = pneg %p213
      $region34: #{tpu_custom_call.1} parent=5 // pred_check_branch
        %216 = sbr.rel (%p214) target = $region36
      $region35: #{tpu_custom_call.1} parent=5 // pred_region
        // Predicated region
        $region37: #{tpu_custom_call.1} parent=35 // pred_check
          %p217 = pneg %p36
        $region38: #{tpu_custom_call.1} parent=35 // pred_check_branch
          %219 = sbr.rel (%p217) target = $region40
        $region39: #{tpu_custom_call.1} parent=35 // pred_region
          %p220 = scmp.lt.s32.totalorder %s16, 1
          %s221 = scalar_select %p220, %s16, 1
          %s222 = smul.addr %s221, 8
          %s223 = scalar_lea.vmem %s0, %s222
        $region40: #{tpu_custom_call.1} parent=35 // pred_fallthru
          _
      $region36: #{tpu_custom_call.1} parent=5 // pred_fallthru
        _
      %p224 = scmp.le.s32.totalorder 1, %s16
      %p225 = scmp.lt.s32.totalorder %s16, 3
      %p226 = pnand %p224, %p225
      %p227 = pneg %p226
      // Predicated region
      $region41: #{tpu_custom_call.1} parent=5 // pred_check
        _
      $region42: #{tpu_custom_call.1} parent=5 // pred_check_branch
        %229 = sbr.rel (%p226) target = $region44
      $region43: #{tpu_custom_call.1} parent=5 // pred_region
        %s230 = ssub.s32 %s16, 1
        // Predicated region
        $region45: #{tpu_custom_call.1} parent=43 // pred_check
          %p231 = pneg %p105
        $region46: #{tpu_custom_call.1} parent=43 // pred_check_branch
          %233 = sbr.rel (%p231) target = $region48
        $region47: #{tpu_custom_call.1} parent=43 // pred_region
          %234 = dma.done [#allocation3], 256
        $region48: #{tpu_custom_call.1} parent=43 // pred_fallthru
          _
        %p235 = scmp.lt.s32.totalorder %s21, 1
        %s236 = scalar_select %p235, %s21, 1
        %s237 = smul.addr %s236, 8
        %s238 = scalar_lea.vmem %s0, %s237
        %p239 = pneg %p42
        %p240 = pneg %p39
        %p241 = pneg %p63
        %p242 = pneg %p60
        %p243 = pneg %p84
        %p244 = pneg %p81
        %p245 = pneg %p105
        %p246 = pneg %p102
        %p247 = pneg %p126
        %p248 = pneg %p123
        %p249 = pneg %p147
        %p250 = pneg %p144
        %p251 = pneg %p173
        %p252 = pneg %p170
        %s253 = sand.u32 %s160, 1
        %s254 = scalar_lea.sflag [#allocation4], %s253
        %s255 = sand.u32 %s160, 1
        %s256 = smul.addr %s255, 8
        %s257 = scalar_lea.vmem [#allocation5], %s256
        %p258 = scmp.lt.s32.totalorder %s21, 1
        %s259 = scalar_select %p258, %s21, 1
        %s260 = smul.addr %s259, 8
        %s261 = scalar_lea.vmem %s0, %s260
        %v263 = vld [vmem:[%s261] sm:$0xff]
        %v264 = vpack.c.bf16 %v263, %v263
        %v265 = vld [vmem:[%s1] sm:$0xf]
        %v266 = vld [vmem:[%s1 + $0x4] sm:$0xf]
        %v267 = vld [vmem:[%s1 + $0x8] sm:$0xf]
        %v268 = vld [vmem:[%s1 + $0xc] sm:$0xf]
        %v273 = vunpack.c.l.b16 %v265
        %v274 = vunpack.c.l.b16 %v266
        %v275 = vunpack.c.l.b16 %v267
        %v276 = vunpack.c.l.b16 %v268
        %v277 = vpack.c.b16 %v274, %v273
        %v278 = vpack.c.b16 %v276, %v275
        %vm281 = vcmask 261120
        %v283 = vsel %vm281, %v264, 0
        %285 = vmatprep.subr.bf16.mxu0 0
        %286 = vmatpush1.bf16.msra.mxu0 %v277
        %287 = vmatprep.subr.bf16.mxu0 0
        %288 = vmatpush1.bf16.msra.mxu0 %v278
        %289 = vmatprep.subr.bf16.mxu0 0
        %290 = vmatpush1.bf16.msra.mxu0 0
        %291 = vmatprep.subr.bf16.mxu0 0
        %292 = vmatpush1.bf16.msra.mxu0 0
        %293 = vmatprep.subr.bf16.mxu0 0
        %294 = vmatpush1.bf16.msra.mxu0 0
        %295 = vmatprep.subr.bf16.mxu0 0
        %296 = vmatpush1.bf16.msra.mxu0 0
        %297 = vmatprep.subr.bf16.mxu0 0
        %298 = vmatpush1.bf16.msra.mxu0 0
        %299 = vmatprep.subr.bf16.mxu0 0
        %300 = vmatpush1.bf16.msra.mxu0 0
        %301 = vmatprep.subr.bf16.mxu0 0
        %302 = vmatpush1.bf16.msra.mxu0 0
        %303 = vmatprep.subr.bf16.mxu0 0
        %304 = vmatpush1.bf16.msra.mxu0 0
        %305 = vmatprep.subr.bf16.mxu0 0
        %306 = vmatpush1.bf16.msra.mxu0 0
        %307 = vmatprep.subr.bf16.mxu0 0
        %308 = vmatpush1.bf16.msra.mxu0 0
        %309 = vmatprep.subr.bf16.mxu0 0
        %310 = vmatpush1.bf16.msra.mxu0 0
        %311 = vmatprep.subr.bf16.mxu0 0
        %312 = vmatpush1.bf16.msra.mxu0 0
        %313 = vmatprep.subr.bf16.mxu0 0
        %314 = vmatpush1.bf16.msra.mxu0 0
        %315 = vmatprep.subr.bf16.mxu0 0
        %316 = vmatpush1.bf16.msra.mxu0 0
        %317 = vmatprep.mubr.bf16.mxu0 0
        %318 = vmatmul.mubr.bf16.gmra.mrb[0].mxu0 %v283
        %v319 = vpop.f32.mrb[0].mxu0
        %v320 = vadd.f32 0.0, %v319
        %v321 = vpop.f32.mrb[0].mxu0
        %v322 = vpop.f32.mrb[0].mxu0
        %v323 = vpop.f32.mrb[0].mxu0
        %324 = vdwg.mxu0
        %326 = vrot.lane.b32.xlu0 %v320, 120
        %v327 = vpop.permute.xlu0 %326
        %329 = vrot.lane.b32.xlu0 %v320, 112
        %v330 = vpop.permute.xlu0 %329
        %332 = vrot.lane.b32.xlu0 %v320, 104
        %v333 = vpop.permute.xlu0 %332
        %v335 = vpack.c.bf16 %v320, %v320
        %v336 = vpack.c.bf16 %v327, %v327
        %v337 = vpack.c.bf16 %v330, %v330
        %v338 = vpack.c.bf16 %v333, %v333
        %v339 = vlaneseq
        %v340 = vshrl.u32 %v339, 7
        %v341 = vlaneseq
        %v342 = vand.u32 %v341, 127
        %vm343 = vcmp.le.s32.totalorder %v342, %v340
        %v344 = vsel %vm343, 0.0, -1e+30
        %346 = vrot.lane.b32.xlu0 %v335, 96
        %v347 = vpop.permute.xlu0 %346
        %vm348 = vcmask 64512
        %v350 = vsel %vm348, %v335, 0
        %v353 = vsel %vm348, %v347, 0
        %355 = vmatprep.subr.bf16.mxu0 0
        %356 = vmatpush1.bf16.xpose.msra.mxu0 %v353
        %357 = vmatprep.subr.bf16.mxu0 0
        %358 = vmatpush1.bf16.xpose.msra.mxu0 0
        %359 = vmatprep.subr.bf16.mxu0 0
        %360 = vmatpush1.bf16.xpose.msra.mxu0 0
        %361 = vmatprep.subr.bf16.mxu0 0
        %362 = vmatpush1.bf16.xpose.msra.mxu0 0
        %363 = vmatprep.subr.bf16.mxu0 0
        %364 = vmatpush1.bf16.xpose.msra.mxu0 0
        %365 = vmatprep.subr.bf16.mxu0 0
        %366 = vmatpush1.bf16.xpose.msra.mxu0 0
        %367 = vmatprep.subr.bf16.mxu0 0
        %368 = vmatpush1.bf16.xpose.msra.mxu0 0
        %369 = vmatprep.subr.bf16.mxu0 0
        %370 = vmatpush1.bf16.xpose.msra.mxu0 0
        %371 = vmatprep.subr.bf16.mxu0 0
        %372 = vmatpush1.bf16.xpose.msra.mxu0 0
        %373 = vmatprep.subr.bf16.mxu0 0
        %374 = vmatpush1.bf16.xpose.msra.mxu0 0
        %375 = vmatprep.subr.bf16.mxu0 0
        %376 = vmatpush1.bf16.xpose.msra.mxu0 0
        %377 = vmatprep.subr.bf16.mxu0 0
        %378 = vmatpush1.bf16.xpose.msra.mxu0 0
        %379 = vmatprep.subr.bf16.mxu0 0
        %380 = vmatpush1.bf16.xpose.msra.mxu0 0
        %381 = vmatprep.subr.bf16.mxu0 0
        %382 = vmatpush1.bf16.xpose.msra.mxu0 0
        %383 = vmatprep.subr.bf16.mxu0 0
        %384 = vmatpush1.bf16.xpose.msra.mxu0 0
        %385 = vmatprep.subr.bf16.mxu0 0
        %386 = vmatpush1.bf16.xpose.msra.mxu0 0
        %387 = vmatprep.mubr.bf16.mxu0 0
        %388 = vmatmul.mubr.bf16.gmra.mrb[0].mxu0 %v350
        %v389 = vpop.f32.mrb[0].mxu0
        %v390 = vadd.f32 %v344, %v389
        %v391 = vpop.f32.mrb[0].mxu0
        %v392 = vpop.f32.mrb[0].mxu0
        %v393 = vpop.f32.mrb[0].mxu0
        %394 = vdwg.mxu0
        %396 = vrot.lane.b32.xlu0 %v336, 96
        %v397 = vpop.permute.xlu0 %396
        %v399 = vsel %vm348, %v336, 0
        %v402 = vsel %vm348, %v397, 0
        %404 = vmatprep.subr.bf16.mxu0 0
        %405 = vmatpush1.bf16.xpose.msra.mxu0 %v402
        %406 = vmatprep.subr.bf16.mxu0 0
        %407 = vmatpush1.bf16.xpose.msra.mxu0 0
        %408 = vmatprep.subr.bf16.mxu0 0
        %409 = vmatpush1.bf16.xpose.msra.mxu0 0
        %410 = vmatprep.subr.bf16.mxu0 0
        %411 = vmatpush1.bf16.xpose.msra.mxu0 0
        %412 = vmatprep.subr.bf16.mxu0 0
        %413 = vmatpush1.bf16.xpose.msra.mxu0 0
        %414 = vmatprep.subr.bf16.mxu0 0
        %415 = vmatpush1.bf16.xpose.msra.mxu0 0
        %416 = vmatprep.subr.bf16.mxu0 0
        %417 = vmatpush1.bf16.xpose.msra.mxu0 0
        %418 = vmatprep.subr.bf16.mxu0 0
        %419 = vmatpush1.bf16.xpose.msra.mxu0 0
        %420 = vmatprep.subr.bf16.mxu0 0
        %421 = vmatpush1.bf16.xpose.msra.mxu0 0
        %422 = vmatprep.subr.bf16.mxu0 0
        %423 = vmatpush1.bf16.xpose.msra.mxu0 0
        %424 = vmatprep.subr.bf16.mxu0 0
        %425 = vmatpush1.bf16.xpose.msra.mxu0 0
        %426 = vmatprep.subr.bf16.mxu0 0
        %427 = vmatpush1.bf16.xpose.msra.mxu0 0
        %428 = vmatprep.subr.bf16.mxu0 0
        %429 = vmatpush1.bf16.xpose.msra.mxu0 0
        %430 = vmatprep.subr.bf16.mxu0 0
        %431 = vmatpush1.bf16.xpose.msra.mxu0 0
        %432 = vmatprep.subr.bf16.mxu0 0
        %433 = vmatpush1.bf16.xpose.msra.mxu0 0
        %434 = vmatprep.subr.bf16.mxu0 0
        %435 = vmatpush1.bf16.xpose.msra.mxu0 0
        %436 = vmatprep.mubr.bf16.mxu0 0
        %437 = vmatmul.mubr.bf16.gmra.mrb[0].mxu0 %v399
        %v438 = vpop.f32.mrb[0].mxu0
        %v439 = vadd.f32 %v344, %v438
        %v440 = vpop.f32.mrb[0].mxu0
        %v441 = vpop.f32.mrb[0].mxu0
        %v442 = vpop.f32.mrb[0].mxu0
        %443 = vdwg.mxu0
        %445 = vrot.lane.b32.xlu0 %v337, 96
        %v446 = vpop.permute.xlu0 %445
        %v448 = vsel %vm348, %v337, 0
        %v451 = vsel %vm348, %v446, 0
        %453 = vmatprep.subr.bf16.mxu0 0
        %454 = vmatpush1.bf16.xpose.msra.mxu0 %v451
        %455 = vmatprep.subr.bf16.mxu0 0
        %456 = vmatpush1.bf16.xpose.msra.mxu0 0
        %457 = vmatprep.subr.bf16.mxu0 0
        %458 = vmatpush1.bf16.xpose.msra.mxu0 0
        %459 = vmatprep.subr.bf16.mxu0 0
        %460 = vmatpush1.bf16.xpose.msra.mxu0 0
        %461 = vmatprep.subr.bf16.mxu0 0
        %462 = vmatpush1.bf16.xpose.msra.mxu0 0
        %463 = vmatprep.subr.bf16.mxu0 0
        %464 = vmatpush1.bf16.xpose.msra.mxu0 0
        %465 = vmatprep.subr.bf16.mxu0 0
        %466 = vmatpush1.bf16.xpose.msra.mxu0 0
        %467 = vmatprep.subr.bf16.mxu0 0
        %468 = vmatpush1.bf16.xpose.msra.mxu0 0
        %469 = vmatprep.subr.bf16.mxu0 0
        %470 = vmatpush1.bf16.xpose.msra.mxu0 0
        %471 = vmatprep.subr.bf16.mxu0 0
        %472 = vmatpush1.bf16.xpose.msra.mxu0 0
        %473 = vmatprep.subr.bf16.mxu0 0
        %474 = vmatpush1.bf16.xpose.msra.mxu0 0
        %475 = vmatprep.subr.bf16.mxu0 0
        %476 = vmatpush1.bf16.xpose.msra.mxu0 0
        %477 = vmatprep.subr.bf16.mxu0 0
        %478 = vmatpush1.bf16.xpose.msra.mxu0 0
        %479 = vmatprep.subr.bf16.mxu0 0
        %480 = vmatpush1.bf16.xpose.msra.mxu0 0
        %481 = vmatprep.subr.bf16.mxu0 0
        %482 = vmatpush1.bf16.xpose.msra.mxu0 0
        %483 = vmatprep.subr.bf16.mxu0 0
        %484 = vmatpush1.bf16.xpose.msra.mxu0 0
        %485 = vmatprep.mubr.bf16.mxu0 0
        %486 = vmatmul.mubr.bf16.gmra.mrb[0].mxu0 %v448
        %v487 = vpop.f32.mrb[0].mxu0
        %v488 = vadd.f32 %v344, %v487
        %v489 = vpop.f32.mrb[0].mxu0
        %v490 = vpop.f32.mrb[0].mxu0
        %v491 = vpop.f32.mrb[0].mxu0
        %492 = vdwg.mxu0
        %494 = vrot.lane.b32.xlu0 %v338, 96
        %v495 = vpop.permute.xlu0 %494
        %v497 = vsel %vm348, %v338, 0
        %v500 = vsel %vm348, %v495, 0
        %502 = vmatprep.subr.bf16.mxu0 0
        %503 = vmatpush1.bf16.xpose.msra.mxu0 %v500
        %504 = vmatprep.subr.bf16.mxu0 0
        %505 = vmatpush1.bf16.xpose.msra.mxu0 0
        %506 = vmatprep.subr.bf16.mxu0 0
        %507 = vmatpush1.bf16.xpose.msra.mxu0 0
        %508 = vmatprep.subr.bf16.mxu0 0
        %509 = vmatpush1.bf16.xpose.msra.mxu0 0
        %510 = vmatprep.subr.bf16.mxu0 0
        %511 = vmatpush1.bf16.xpose.msra.mxu0 0
        %512 = vmatprep.subr.bf16.mxu0 0
        %513 = vmatpush1.bf16.xpose.msra.mxu0 0
        %514 = vmatprep.subr.bf16.mxu0 0
        %515 = vmatpush1.bf16.xpose.msra.mxu0 0
        %516 = vmatprep.subr.bf16.mxu0 0
        %517 = vmatpush1.bf16.xpose.msra.mxu0 0
        %518 = vmatprep.subr.bf16.mxu0 0
        %519 = vmatpush1.bf16.xpose.msra.mxu0 0
        %520 = vmatprep.subr.bf16.mxu0 0
        %521 = vmatpush1.bf16.xpose.msra.mxu0 0
        %522 = vmatprep.subr.bf16.mxu0 0
        %523 = vmatpush1.bf16.xpose.msra.mxu0 0
        %524 = vmatprep.subr.bf16.mxu0 0
        %525 = vmatpush1.bf16.xpose.msra.mxu0 0
        %526 = vmatprep.subr.bf16.mxu0 0
        %527 = vmatpush1.bf16.xpose.msra.mxu0 0
        %528 = vmatprep.subr.bf16.mxu0 0
        %529 = vmatpush1.bf16.xpose.msra.mxu0 0
        %530 = vmatprep.subr.bf16.mxu0 0
        %531 = vmatpush1.bf16.xpose.msra.mxu0 0
        %532 = vmatprep.subr.bf16.mxu0 0
        %533 = vmatpush1.bf16.xpose.msra.mxu0 0
        %534 = vmatprep.mubr.bf16.mxu0 0
        %535 = vmatmul.mubr.bf16.gmra.mrb[0].mxu0 %v497
        %v536 = vpop.f32.mrb[0].mxu0
        %v537 = vadd.f32 %v344, %v536
        %v538 = vpop.f32.mrb[0].mxu0
        %v539 = vpop.f32.mrb[0].mxu0
        %v540 = vpop.f32.mrb[0].mxu0
        %541 = vdwg.mxu0
        %v542 = vsel %vm348, %v390, -inf
        %543 = vmax.xlane.f32.xlu0 %v542
        %v544 = vpop.xlane.xlu0 %543
        %v545 = vsel %vm348, %v439, -inf
        %546 = vmax.xlane.f32.xlu0 %v545
        %v547 = vpop.xlane.xlu0 %546
        %v548 = vsel %vm348, %v488, -inf
        %549 = vmax.xlane.f32.xlu0 %v548
        %v550 = vpop.xlane.xlu0 %549
        %v551 = vsel %vm348, %v537, -inf
        %552 = vmax.xlane.f32.xlu0 %v551
        %v553 = vpop.xlane.xlu0 %552
        %v554 = vsub.f32 %v390, %v544
        %v555 = vsub.f32 %v439, %v547
        %v556 = vsub.f32 %v488, %v550
        %v557 = vsub.f32 %v537, %v553
        %v558 = vmul.f32 %v554, 1.442695
        %v559 = vpow.pop %v558
        %v560 = vmul.f32 %v555, 1.442695
        %v561 = vpow.pop %v560
        %v562 = vmul.f32 %v556, 1.442695
        %v563 = vpow.pop %v562
        %v564 = vmul.f32 %v557, 1.442695
        %v565 = vpow.pop %v564
        %v566 = vsel %vm348, %v559, 0.0
        %567 = vadd.xlane.f32.xlu0 %v566
        %v568 = vpop.xlane.xlu0 %567
        %v569 = vsel %vm348, %v561, 0.0
        %570 = vadd.xlane.f32.xlu0 %v569
        %v571 = vpop.xlane.xlu0 %570
        %v572 = vsel %vm348, %v563, 0.0
        %573 = vadd.xlane.f32.xlu0 %v572
        %v574 = vpop.xlane.xlu0 %573
        %v575 = vsel %vm348, %v565, 0.0
        %576 = vadd.xlane.f32.xlu0 %v575
        %v577 = vpop.xlane.xlu0 %576
        %v578 = vrcp.pop %v568
        %v579 = vrcp.pop %v571
        %v580 = vrcp.pop %v574
        %v581 = vrcp.pop %v577
        %v582 = vmul.f32 %v559, %v578
        %v583 = vmul.f32 %v561, %v579
        %v584 = vmul.f32 %v563, %v580
        %v585 = vmul.f32 %v565, %v581
        %v586 = vpack.c.bf16 %v582, %v582
        %v587 = vpack.c.bf16 %v583, %v583
        %v588 = vpack.c.bf16 %v584, %v584
        %v589 = vpack.c.bf16 %v585, %v585
        %590 = vrot.lane.b32.xlu0 %v335, 64
        %v591 = vpop.permute.xlu0 %590
        %v593 = vsel %vm348, %v586, 0
        %vm595 = vcmask 1043456
        %v597 = vsel %vm595, %v591, 0
        %599 = vmatprep.subr.bf16.mxu0 0
        %600 = vmatpush1.bf16.msra.mxu0 %v597
        %601 = vmatprep.subr.bf16.mxu0 0
        %602 = vmatpush1.bf16.msra.mxu0 0
        %603 = vmatprep.subr.bf16.mxu0 0
        %604 = vmatpush1.bf16.msra.mxu0 0
        %605 = vmatprep.subr.bf16.mxu0 0
        %606 = vmatpush1.bf16.msra.mxu0 0
        %607 = vmatprep.subr.bf16.mxu0 0
        %608 = vmatpush1.bf16.msra.mxu0 0
        %609 = vmatprep.subr.bf16.mxu0 0
        %610 = vmatpush1.bf16.msra.mxu0 0
        %611 = vmatprep.subr.bf16.mxu0 0
        %612 = vmatpush1.bf16.msra.mxu0 0
        %613 = vmatprep.subr.bf16.mxu0 0
        %614 = vmatpush1.bf16.msra.mxu0 0
        %615 = vmatprep.subr.bf16.mxu0 0
        %616 = vmatpush1.bf16.msra.mxu0 0
        %617 = vmatprep.subr.bf16.mxu0 0
        %618 = vmatpush1.bf16.msra.mxu0 0
        %619 = vmatprep.subr.bf16.mxu0 0
        %620 = vmatpush1.bf16.msra.mxu0 0
        %621 = vmatprep.subr.bf16.mxu0 0
        %622 = vmatpush1.bf16.msra.mxu0 0
        %623 = vmatprep.subr.bf16.mxu0 0
        %624 = vmatpush1.bf16.msra.mxu0 0
        %625 = vmatprep.subr.bf16.mxu0 0
        %626 = vmatpush1.bf16.msra.mxu0 0
        %627 = vmatprep.subr.bf16.mxu0 0
        %628 = vmatpush1.bf16.msra.mxu0 0
        %629 = vmatprep.subr.bf16.mxu0 0
        %630 = vmatpush1.bf16.msra.mxu0 0
        %631 = vmatprep.mubr.bf16.mxu0 0
        %632 = vmatmul.mubr.bf16.gmra.mrb[0].mxu0 %v593
        %v633 = vpop.f32.mrb[0].mxu0
        %v634 = vadd.f32 0.0, %v633
        %v635 = vpop.f32.mrb[0].mxu0
        %v636 = vpop.f32.mrb[0].mxu0
        %v637 = vpop.f32.mrb[0].mxu0
        %638 = vdwg.mxu0
        %639 = vrot.lane.b32.xlu0 %v336, 64
        %v640 = vpop.permute.xlu0 %639
        %v642 = vsel %vm348, %v587, 0
        %v645 = vsel %vm595, %v640, 0
        %647 = vmatprep.subr.bf16.mxu0 0
        %648 = vmatpush1.bf16.msra.mxu0 %v645
        %649 = vmatprep.subr.bf16.mxu0 0
        %650 = vmatpush1.bf16.msra.mxu0 0
        %651 = vmatprep.subr.bf16.mxu0 0
        %652 = vmatpush1.bf16.msra.mxu0 0
        %653 = vmatprep.subr.bf16.mxu0 0
        %654 = vmatpush1.bf16.msra.mxu0 0
        %655 = vmatprep.subr.bf16.mxu0 0
        %656 = vmatpush1.bf16.msra.mxu0 0
        %657 = vmatprep.subr.bf16.mxu0 0
        %658 = vmatpush1.bf16.msra.mxu0 0
        %659 = vmatprep.subr.bf16.mxu0 0
        %660 = vmatpush1.bf16.msra.mxu0 0
        %661 = vmatprep.subr.bf16.mxu0 0
        %662 = vmatpush1.bf16.msra.mxu0 0
        %663 = vmatprep.subr.bf16.mxu0 0
        %664 = vmatpush1.bf16.msra.mxu0 0
        %665 = vmatprep.subr.bf16.mxu0 0
        %666 = vmatpush1.bf16.msra.mxu0 0
        %667 = vmatprep.subr.bf16.mxu0 0
        %668 = vmatpush1.bf16.msra.mxu0 0
        %669 = vmatprep.subr.bf16.mxu0 0
        %670 = vmatpush1.bf16.msra.mxu0 0
        %671 = vmatprep.subr.bf16.mxu0 0
        %672 = vmatpush1.bf16.msra.mxu0 0
        %673 = vmatprep.subr.bf16.mxu0 0
        %674 = vmatpush1.bf16.msra.mxu0 0
        %675 = vmatprep.subr.bf16.mxu0 0
        %676 = vmatpush1.bf16.msra.mxu0 0
        %677 = vmatprep.subr.bf16.mxu0 0
        %678 = vmatpush1.bf16.msra.mxu0 0
        %679 = vmatprep.mubr.bf16.mxu0 0
        %680 = vmatmul.mubr.bf16.gmra.mrb[0].mxu0 %v642
        %v681 = vpop.f32.mrb[0].mxu0
        %v682 = vadd.f32 0.0, %v681
        %v683 = vpop.f32.mrb[0].mxu0
        %v684 = vpop.f32.mrb[0].mxu0
        %v685 = vpop.f32.mrb[0].mxu0
        %686 = vdwg.mxu0
        %687 = vrot.lane.b32.xlu0 %v337, 64
        %v688 = vpop.permute.xlu0 %687
        %v690 = vsel %vm348, %v588, 0
        %v693 = vsel %vm595, %v688, 0
        %695 = vmatprep.subr.bf16.mxu0 0
        %696 = vmatpush1.bf16.msra.mxu0 %v693
        %697 = vmatprep.subr.bf16.mxu0 0
        %698 = vmatpush1.bf16.msra.mxu0 0
        %699 = vmatprep.subr.bf16.mxu0 0
        %700 = vmatpush1.bf16.msra.mxu0 0
        %701 = vmatprep.subr.bf16.mxu0 0
        %702 = vmatpush1.bf16.msra.mxu0 0
        %703 = vmatprep.subr.bf16.mxu0 0
        %704 = vmatpush1.bf16.msra.mxu0 0
        %705 = vmatprep.subr.bf16.mxu0 0
        %706 = vmatpush1.bf16.msra.mxu0 0
        %707 = vmatprep.subr.bf16.mxu0 0
        %708 = vmatpush1.bf16.msra.mxu0 0
        %709 = vmatprep.subr.bf16.mxu0 0
        %710 = vmatpush1.bf16.msra.mxu0 0
        %711 = vmatprep.subr.bf16.mxu0 0
        %712 = vmatpush1.bf16.msra.mxu0 0
        %713 = vmatprep.subr.bf16.mxu0 0
        %714 = vmatpush1.bf16.msra.mxu0 0
        %715 = vmatprep.subr.bf16.mxu0 0
        %716 = vmatpush1.bf16.msra.mxu0 0
        %717 = vmatprep.subr.bf16.mxu0 0
        %718 = vmatpush1.bf16.msra.mxu0 0
        %719 = vmatprep.subr.bf16.mxu0 0
        %720 = vmatpush1.bf16.msra.mxu0 0
        %721 = vmatprep.subr.bf16.mxu0 0
        %722 = vmatpush1.bf16.msra.mxu0 0
        %723 = vmatprep.subr.bf16.mxu0 0
        %724 = vmatpush1.bf16.msra.mxu0 0
        %725 = vmatprep.subr.bf16.mxu0 0
        %726 = vmatpush1.bf16.msra.mxu0 0
        %727 = vmatprep.mubr.bf16.mxu0 0
        %728 = vmatmul.mubr.bf16.gmra.mrb[0].mxu0 %v690
        %v729 = vpop.f32.mrb[0].mxu0
        %v730 = vadd.f32 0.0, %v729
        %v731 = vpop.f32.mrb[0].mxu0
        %v732 = vpop.f32.mrb[0].mxu0
        %v733 = vpop.f32.mrb[0].mxu0
        %734 = vdwg.mxu0
        %735 = vrot.lane.b32.xlu0 %v338, 64
        %v736 = vpop.permute.xlu0 %735
        %v738 = vsel %vm348, %v589, 0
        %v741 = vsel %vm595, %v736, 0
        %743 = vmatprep.subr.bf16.mxu0 0
        %744 = vmatpush1.bf16.msra.mxu0 %v741
        %745 = vmatprep.subr.bf16.mxu0 0
        %746 = vmatpush1.bf16.msra.mxu0 0
        %747 = vmatprep.subr.bf16.mxu0 0
        %748 = vmatpush1.bf16.msra.mxu0 0
        %749 = vmatprep.subr.bf16.mxu0 0
        %750 = vmatpush1.bf16.msra.mxu0 0
        %751 = vmatprep.subr.bf16.mxu0 0
        %752 = vmatpush1.bf16.msra.mxu0 0
        %753 = vmatprep.subr.bf16.mxu0 0
        %754 = vmatpush1.bf16.msra.mxu0 0
        %755 = vmatprep.subr.bf16.mxu0 0
        %756 = vmatpush1.bf16.msra.mxu0 0
        %757 = vmatprep.subr.bf16.mxu0 0
        %758 = vmatpush1.bf16.msra.mxu0 0
        %759 = vmatprep.subr.bf16.mxu0 0
        %760 = vmatpush1.bf16.msra.mxu0 0
        %761 = vmatprep.subr.bf16.mxu0 0
        %762 = vmatpush1.bf16.msra.mxu0 0
        %763 = vmatprep.subr.bf16.mxu0 0
        %764 = vmatpush1.bf16.msra.mxu0 0
        %765 = vmatprep.subr.bf16.mxu0 0
        %766 = vmatpush1.bf16.msra.mxu0 0
        %767 = vmatprep.subr.bf16.mxu0 0
        %768 = vmatpush1.bf16.msra.mxu0 0
        %769 = vmatprep.subr.bf16.mxu0 0
        %770 = vmatpush1.bf16.msra.mxu0 0
        %771 = vmatprep.subr.bf16.mxu0 0
        %772 = vmatpush1.bf16.msra.mxu0 0
        %773 = vmatprep.subr.bf16.mxu0 0
        %774 = vmatpush1.bf16.msra.mxu0 0
        %775 = vmatprep.mubr.bf16.mxu0 0
        %776 = vmatmul.mubr.bf16.gmra.mrb[0].mxu0 %v738
        %v777 = vpop.f32.mrb[0].mxu0
        %v778 = vadd.f32 0.0, %v777
        %v779 = vpop.f32.mrb[0].mxu0
        %v780 = vpop.f32.mrb[0].mxu0
        %v781 = vpop.f32.mrb[0].mxu0
        %782 = vdwg.mxu0
        %v783 = vpack.c.bf16 %v634, %v634
        %v784 = vpack.c.bf16 %v682, %v682
        %v785 = vpack.c.bf16 %v730, %v730
        %v786 = vpack.c.bf16 %v778, %v778
        %v787 = vld [vmem:[%s2] sm:$0xf]
        %v788 = vld [vmem:[%s2 + $0x4] sm:$0xf]
        %v789 = vld [vmem:[%s2 + $0x8] sm:$0xf]
        %v790 = vld [vmem:[%s2 + $0xc] sm:$0xf]
        %v792 = vsel %vm348, %v783, 0
        %v795 = vsel %vm595, %v787, 0
        %797 = vmatprep.subr.bf16.mxu0 0
        %798 = vmatpush1.bf16.msra.mxu0 %v795
        %799 = vmatprep.subr.bf16.mxu0 0
        %800 = vmatpush1.bf16.msra.mxu0 0
        %801 = vmatprep.subr.bf16.mxu0 0
        %802 = vmatpush1.bf16.msra.mxu0 0
        %803 = vmatprep.subr.bf16.mxu0 0
        %804 = vmatpush1.bf16.msra.mxu0 0
        %805 = vmatprep.subr.bf16.mxu0 0
        %806 = vmatpush1.bf16.msra.mxu0 0
        %807 = vmatprep.subr.bf16.mxu0 0
        %808 = vmatpush1.bf16.msra.mxu0 0
        %809 = vmatprep.subr.bf16.mxu0 0
        %810 = vmatpush1.bf16.msra.mxu0 0
        %811 = vmatprep.subr.bf16.mxu0 0
        %812 = vmatpush1.bf16.msra.mxu0 0
        %813 = vmatprep.subr.bf16.mxu0 0
        %814 = vmatpush1.bf16.msra.mxu0 0
        %815 = vmatprep.subr.bf16.mxu0 0
        %816 = vmatpush1.bf16.msra.mxu0 0
        %817 = vmatprep.subr.bf16.mxu0 0
        %818 = vmatpush1.bf16.msra.mxu0 0
        %819 = vmatprep.subr.bf16.mxu0 0
        %820 = vmatpush1.bf16.msra.mxu0 0
        %821 = vmatprep.subr.bf16.mxu0 0
        %822 = vmatpush1.bf16.msra.mxu0 0
        %823 = vmatprep.subr.bf16.mxu0 0
        %824 = vmatpush1.bf16.msra.mxu0 0
        %825 = vmatprep.subr.bf16.mxu0 0
        %826 = vmatpush1.bf16.msra.mxu0 0
        %827 = vmatprep.subr.bf16.mxu0 0
        %828 = vmatpush1.bf16.msra.mxu0 0
        %829 = vmatprep.mubr.bf16.mxu0 0
        %830 = vmatmul.mubr.bf16.gmra.mrb[0].mxu0 %v792
        %v831 = vpop.f32.mrb[0].mxu0
        %v832 = vadd.f32 0.0, %v831
        %v833 = vpop.f32.mrb[0].mxu0
        %v834 = vpop.f32.mrb[0].mxu0
        %v835 = vpop.f32.mrb[0].mxu0
        %836 = vdwg.mxu0
        %v838 = vsel %vm348, %v784, 0
        %v841 = vsel %vm595, %v788, 0
        %843 = vmatprep.subr.bf16.mxu0 0
        %844 = vmatpush1.bf16.msra.mxu0 %v841
        %845 = vmatprep.subr.bf16.mxu0 0
        %846 = vmatpush1.bf16.msra.mxu0 0
        %847 = vmatprep.subr.bf16.mxu0 0
        %848 = vmatpush1.bf16.msra.mxu0 0
        %849 = vmatprep.subr.bf16.mxu0 0
        %850 = vmatpush1.bf16.msra.mxu0 0
        %851 = vmatprep.subr.bf16.mxu0 0
        %852 = vmatpush1.bf16.msra.mxu0 0
        %853 = vmatprep.subr.bf16.mxu0 0
        %854 = vmatpush1.bf16.msra.mxu0 0
        %855 = vmatprep.subr.bf16.mxu0 0
        %856 = vmatpush1.bf16.msra.mxu0 0
        %857 = vmatprep.subr.bf16.mxu0 0
        %858 = vmatpush1.bf16.msra.mxu0 0
        %859 = vmatprep.subr.bf16.mxu0 0
        %860 = vmatpush1.bf16.msra.mxu0 0
        %861 = vmatprep.subr.bf16.mxu0 0
        %862 = vmatpush1.bf16.msra.mxu0 0
        %863 = vmatprep.subr.bf16.mxu0 0
        %864 = vmatpush1.bf16.msra.mxu0 0
        %865 = vmatprep.subr.bf16.mxu0 0
        %866 = vmatpush1.bf16.msra.mxu0 0
        %867 = vmatprep.subr.bf16.mxu0 0
        %868 = vmatpush1.bf16.msra.mxu0 0
        %869 = vmatprep.subr.bf16.mxu0 0
        %870 = vmatpush1.bf16.msra.mxu0 0
        %871 = vmatprep.subr.bf16.mxu0 0
        %872 = vmatpush1.bf16.msra.mxu0 0
        %873 = vmatprep.subr.bf16.mxu0 0
        %874 = vmatpush1.bf16.msra.mxu0 0
        %875 = vmatprep.mubr.bf16.mxu0 0
        %876 = vmatmul.mubr.bf16.gmra.mrb[0].mxu0 %v838
        %v877 = vpop.f32.mrb[0].mxu0
        %v878 = vadd.f32 0.0, %v877
        %v879 = vpop.f32.mrb[0].mxu0
        %v880 = vpop.f32.mrb[0].mxu0
        %v881 = vpop.f32.mrb[0].mxu0
        %882 = vdwg.mxu0
        %v884 = vsel %vm348, %v785, 0
        %v887 = vsel %vm595, %v789, 0
        %889 = vmatprep.subr.bf16.mxu0 0
        %890 = vmatpush1.bf16.msra.mxu0 %v887
        %891 = vmatprep.subr.bf16.mxu0 0
        %892 = vmatpush1.bf16.msra.mxu0 0
        %893 = vmatprep.subr.bf16.mxu0 0
        %894 = vmatpush1.bf16.msra.mxu0 0
        %895 = vmatprep.subr.bf16.mxu0 0
        %896 = vmatpush1.bf16.msra.mxu0 0
        %897 = vmatprep.subr.bf16.mxu0 0
        %898 = vmatpush1.bf16.msra.mxu0 0
        %899 = vmatprep.subr.bf16.mxu0 0
        %900 = vmatpush1.bf16.msra.mxu0 0
        %901 = vmatprep.subr.bf16.mxu0 0
        %902 = vmatpush1.bf16.msra.mxu0 0
        %903 = vmatprep.subr.bf16.mxu0 0
        %904 = vmatpush1.bf16.msra.mxu0 0
        %905 = vmatprep.subr.bf16.mxu0 0
        %906 = vmatpush1.bf16.msra.mxu0 0
        %907 = vmatprep.subr.bf16.mxu0 0
        %908 = vmatpush1.bf16.msra.mxu0 0
        %909 = vmatprep.subr.bf16.mxu0 0
        %910 = vmatpush1.bf16.msra.mxu0 0
        %911 = vmatprep.subr.bf16.mxu0 0
        %912 = vmatpush1.bf16.msra.mxu0 0
        %913 = vmatprep.subr.bf16.mxu0 0
        %914 = vmatpush1.bf16.msra.mxu0 0
        %915 = vmatprep.subr.bf16.mxu0 0
        %916 = vmatpush1.bf16.msra.mxu0 0
        %917 = vmatprep.subr.bf16.mxu0 0
        %918 = vmatpush1.bf16.msra.mxu0 0
        %919 = vmatprep.subr.bf16.mxu0 0
        %920 = vmatpush1.bf16.msra.mxu0 0
        %921 = vmatprep.mubr.bf16.mxu0 0
        %922 = vmatmul.mubr.bf16.gmra.mrb[0].mxu0 %v884
        %v923 = vpop.f32.mrb[0].mxu0
        %v924 = vadd.f32 0.0, %v923
        %v925 = vpop.f32.mrb[0].mxu0
        %v926 = vpop.f32.mrb[0].mxu0
        %v927 = vpop.f32.mrb[0].mxu0
        %928 = vdwg.mxu0
        %v930 = vsel %vm348, %v786, 0
        %v933 = vsel %vm595, %v790, 0
        %935 = vmatprep.subr.bf16.mxu0 0
        %936 = vmatpush1.bf16.msra.mxu0 %v933
        %937 = vmatprep.subr.bf16.mxu0 0
        %938 = vmatpush1.bf16.msra.mxu0 0
        %939 = vmatprep.subr.bf16.mxu0 0
        %940 = vmatpush1.bf16.msra.mxu0 0
        %941 = vmatprep.subr.bf16.mxu0 0
        %942 = vmatpush1.bf16.msra.mxu0 0
        %943 = vmatprep.subr.bf16.mxu0 0
        %944 = vmatpush1.bf16.msra.mxu0 0
        %945 = vmatprep.subr.bf16.mxu0 0
        %946 = vmatpush1.bf16.msra.mxu0 0
        %947 = vmatprep.subr.bf16.mxu0 0
        %948 = vmatpush1.bf16.msra.mxu0 0
        %949 = vmatprep.subr.bf16.mxu0 0
        %950 = vmatpush1.bf16.msra.mxu0 0
        %951 = vmatprep.subr.bf16.mxu0 0
        %952 = vmatpush1.bf16.msra.mxu0 0
        %953 = vmatprep.subr.bf16.mxu0 0
        %954 = vmatpush1.bf16.msra.mxu0 0
        %955 = vmatprep.subr.bf16.mxu0 0
        %956 = vmatpush1.bf16.msra.mxu0 0
        %957 = vmatprep.subr.bf16.mxu0 0
        %958 = vmatpush1.bf16.msra.mxu0 0
        %959 = vmatprep.subr.bf16.mxu0 0
        %960 = vmatpush1.bf16.msra.mxu0 0
        %961 = vmatprep.subr.bf16.mxu0 0
        %962 = vmatpush1.bf16.msra.mxu0 0
        %963 = vmatprep.subr.bf16.mxu0 0
        %964 = vmatpush1.bf16.msra.mxu0 0
        %965 = vmatprep.subr.bf16.mxu0 0
        %966 = vmatpush1.bf16.msra.mxu0 0
        %967 = vmatprep.mubr.bf16.mxu0 0
        %968 = vmatmul.mubr.bf16.gmra.mrb[0].mxu0 %v930
        %v969 = vpop.f32.mrb[0].mxu0
        %v970 = vadd.f32 0.0, %v969
        %v971 = vpop.f32.mrb[0].mxu0
        %v972 = vpop.f32.mrb[0].mxu0
        %v973 = vpop.f32.mrb[0].mxu0
        %974 = vdwg.mxu0
        %v975 = vsel %vm281, %v832, 0.0
        %v976 = vsel %vm281, %v878, 0.0
        %v977 = vadd.f32 %v975, %v976
        %v978 = vsel %vm281, %v924, 0.0
        %v979 = vadd.f32 %v977, %v978
        %v980 = vsel %vm281, %v970, 0.0
        %v981 = vadd.f32 %v979, %v980
        %v982 = vld [vmem:[%s5] sm:$0x3]
        %v983 = vand.u32 2147483647, %v982
        %v984 = vmul.f32 %v981, %v981
        %v985 = vsel %vm281, %v984, 0.0
        %986 = vadd.xlane.f32.xlu0 %v985
        %v987 = vpop.xlane.xlu0 %986
        %v988 = vrsqrt.pop %v987
        %v989 = vmul.f32 %v981, %v988
        %v990 = vsub.f32 %v989, %v263
        %v991 = vlaneseq
        %v992 = vshrl.u32 %v991, 7
        %v993 = vsub.s32 0, %v992
        %v994 = vrot.slane %v983, %v993
        %v995 = vmul.f32 %v994, %v990
        %v996 = vadd.f32 %v263, %v995
        %v997 = vmul.f32 %v996, %v996
        %v998 = vsel %vm281, %v997, 0.0
        %999 = vadd.xlane.f32.xlu0 %v998
        %v1000 = vpop.xlane.xlu0 %999
        %v1001 = vrsqrt.pop %v1000
        %v1002 = vmul.f32 %v996, %v1001
        %v1003 = vpack.c.bf16 %v1002, %v1002
        %v1004 = vld [vmem:[#allocation2] sm:$0xf]
        %v1005 = vld [vmem:[#allocation2 + $0x4] sm:$0xf]
        %v1006 = vld [vmem:[#allocation2 + $0x8] sm:$0xf]
        %v1007 = vld [vmem:[#allocation2 + $0xc] sm:$0xf]
        %v1012 = vunpack.c.l.b16 %v1004
        %v1013 = vunpack.c.l.b16 %v1005
        %v1014 = vunpack.c.l.b16 %v1006
        %v1015 = vunpack.c.l.b16 %v1007
        %v1016 = vpack.c.b16 %v1013, %v1012
        %v1017 = vpack.c.b16 %v1015, %v1014
        %v1021 = vsel %vm281, %v1003, 0
        %1023 = vmatprep.subr.bf16.mxu0 0
        %1024 = vmatpush1.bf16.msra.mxu0 %v1016
        %1025 = vmatprep.subr.bf16.mxu0 0
        %1026 = vmatpush1.bf16.msra.mxu0 %v1017
        %1027 = vmatprep.subr.bf16.mxu0 0
        %1028 = vmatpush1.bf16.msra.mxu0 0
        %1029 = vmatprep.subr.bf16.mxu0 0
        %1030 = vmatpush1.bf16.msra.mxu0 0
        %1031 = vmatprep.subr.bf16.mxu0 0
        %1032 = vmatpush1.bf16.msra.mxu0 0
        %1033 = vmatprep.subr.bf16.mxu0 0
        %1034 = vmatpush1.bf16.msra.mxu0 0
        %1035 = vmatprep.subr.bf16.mxu0 0
        %1036 = vmatpush1.bf16.msra.mxu0 0
        %1037 = vmatprep.subr.bf16.mxu0 0
        %1038 = vmatpush1.bf16.msra.mxu0 0
        %1039 = vmatprep.subr.bf16.mxu0 0
        %1040 = vmatpush1.bf16.msra.mxu0 0
        %1041 = vmatprep.subr.bf16.mxu0 0
        %1042 = vmatpush1.bf16.msra.mxu0 0
        %1043 = vmatprep.subr.bf16.mxu0 0
        %1044 = vmatpush1.bf16.msra.mxu0 0
        %1045 = vmatprep.subr.bf16.mxu0 0
        %1046 = vmatpush1.bf16.msra.mxu0 0
        %1047 = vmatprep.subr.bf16.mxu0 0
        %1048 = vmatpush1.bf16.msra.mxu0 0
        %1049 = vmatprep.subr.bf16.mxu0 0
        %1050 = vmatpush1.bf16.msra.mxu0 0
        %1051 = vmatprep.subr.bf16.mxu0 0
        %1052 = vmatpush1.bf16.msra.mxu0 0
        %1053 = vmatprep.subr.bf16.mxu0 0
        %1054 = vmatpush1.bf16.msra.mxu0 0
        %1055 = vmatprep.mubr.bf16.mxu0 0
        %1056 = vmatmul.mubr.bf16.gmra.mrb[0].mxu0 %v1021
        %v1057 = vpop.f32.mrb[0].mxu0
        %v1058 = vadd.f32 0.0, %v1057
        %v1059 = vpop.f32.mrb[0].mxu0
        %v1060 = vpop.f32.mrb[0].mxu0
        %v1061 = vpop.f32.mrb[0].mxu0
        %1062 = vdwg.mxu0
        %v1063 = vxor.u32 %v1058, 2147483648
        %v1064 = vmul.f32 %v1063, 1.442695
        %v1065 = vpow.pop %v1064
        %v1066 = vadd.f32 %v1065, 1.0
        %v1067 = vrcp.pop %v1066
        %v1068 = vmul.f32 1.0, %v1067
        %v1069 = vmul.f32 %v1058, %v1068
        %1071 = vrot.lane.b32.xlu0 %v1058, 64
        %v1072 = vpop.permute.xlu0 %1071
        %v1074 = vmul.f32 %v1069, %v1072
        %v1075 = vpack.c.bf16 %v1074, %v1074
        %v1076 = vld [vmem:[%s4] sm:$0xf]
        %v1077 = vld [vmem:[%s4 + $0x4] sm:$0xf]
        %v1078 = vld [vmem:[%s4 + $0x8] sm:$0xf]
        %v1079 = vld [vmem:[%s4 + $0xc] sm:$0xf]
        %v1080 = vld [vmem:[%s4 + $0x10] sm:$0xf]
        %v1081 = vld [vmem:[%s4 + $0x14] sm:$0xf]
        %v1082 = vld [vmem:[%s4 + $0x18] sm:$0xf]
        %v1083 = vld [vmem:[%s4 + $0x1c] sm:$0xf]
        %v1092 = vunpack.c.l.b16 %v1076
        %v1093 = vunpack.c.l.b16 %v1077
        %v1094 = vunpack.c.l.b16 %v1078
        %v1095 = vunpack.c.l.b16 %v1079
        %v1096 = vunpack.c.l.b16 %v1080
        %v1097 = vunpack.c.l.b16 %v1081
        %v1098 = vunpack.c.l.b16 %v1082
        %v1099 = vunpack.c.l.b16 %v1083
        %v1100 = vpack.c.b16 %v1093, %v1092
        %v1101 = vpack.c.b16 %v1095, %v1094
        %v1102 = vpack.c.b16 %v1097, %v1096
        %v1103 = vpack.c.b16 %v1099, %v1098
        %vm1108 = vcmask 523264
        %v1110 = vsel %vm1108, %v1075, 0
        %1112 = vmatprep.subr.bf16.mxu0 0
        %1113 = vmatpush1.bf16.msra.mxu0 %v1100
        %1114 = vmatprep.subr.bf16.mxu0 0
        %1115 = vmatpush1.bf16.msra.mxu0 %v1101
        %1116 = vmatprep.subr.bf16.mxu0 0
        %1117 = vmatpush1.bf16.msra.mxu0 %v1102
        %1118 = vmatprep.subr.bf16.mxu0 0
        %1119 = vmatpush1.bf16.msra.mxu0 %v1103
        %1120 = vmatprep.subr.bf16.mxu0 0
        %1121 = vmatpush1.bf16.msra.mxu0 0
        %1122 = vmatprep.subr.bf16.mxu0 0
        %1123 = vmatpush1.bf16.msra.mxu0 0
        %1124 = vmatprep.subr.bf16.mxu0 0
        %1125 = vmatpush1.bf16.msra.mxu0 0
        %1126 = vmatprep.subr.bf16.mxu0 0
        %1127 = vmatpush1.bf16.msra.mxu0 0
        %1128 = vmatprep.subr.bf16.mxu0 0
        %1129 = vmatpush1.bf16.msra.mxu0 0
        %1130 = vmatprep.subr.bf16.mxu0 0
        %1131 = vmatpush1.bf16.msra.mxu0 0
        %1132 = vmatprep.subr.bf16.mxu0 0
        %1133 = vmatpush1.bf16.msra.mxu0 0
        %1134 = vmatprep.subr.bf16.mxu0 0
        %1135 = vmatpush1.bf16.msra.mxu0 0
        %1136 = vmatprep.subr.bf16.mxu0 0
        %1137 = vmatpush1.bf16.msra.mxu0 0
        %1138 = vmatprep.subr.bf16.mxu0 0
        %1139 = vmatpush1.bf16.msra.mxu0 0
        %1140 = vmatprep.subr.bf16.mxu0 0
        %1141 = vmatpush1.bf16.msra.mxu0 0
        %1142 = vmatprep.subr.bf16.mxu0 0
        %1143 = vmatpush1.bf16.msra.mxu0 0
        %1144 = vmatprep.mubr.bf16.mxu0 0
        %1145 = vmatmul.mubr.bf16.gmra.mrb[0].mxu0 %v1110
        %v1146 = vpop.f32.mrb[0].mxu0
        %v1147 = vadd.f32 0.0, %v1146
        %v1148 = vpop.f32.mrb[0].mxu0
        %v1149 = vpop.f32.mrb[0].mxu0
        %v1150 = vpop.f32.mrb[0].mxu0
        %1151 = vdwg.mxu0
        %v1152 = vmul.f32 %v1147, %v1147
        %v1153 = vsel %vm281, %v1152, 0.0
        %1154 = vadd.xlane.f32.xlu0 %v1153
        %v1155 = vpop.xlane.xlu0 %1154
        %v1156 = vrsqrt.pop %v1155
        %v1157 = vmul.f32 %v1147, %v1156
        %v1158 = vsub.f32 %v1157, %v1002
        %v1159 = vlaneseq
        %v1160 = vshrl.u32 %v1159, 7
        %v1161 = vsub.s32 1, %v1160
        %v1162 = vrot.slane %v983, %v1161
        %v1163 = vmul.f32 %v1162, %v1158
        %v1164 = vadd.f32 %v1002, %v1163
        %v1165 = vmul.f32 %v1164, %v1164
        %v1166 = vsel %vm281, %v1165, 0.0
        %1167 = vadd.xlane.f32.xlu0 %v1166
        %v1168 = vpop.xlane.xlu0 %1167
        %v1169 = vrsqrt.pop %v1168
        %v1170 = vmul.f32 %v1164, %v1169
        %1171 = vst.msk [vmem:[%s257] sm:$0xff] %vm281, %v1170
        %s1172 = sand.u32 %s160, 1
        %s1173 = scalar_lea.sflag [#allocation4], %s1172
        %s1174 = sand.u32 %s160, 1
        %s1175 = smul.addr %s1174, 8
        %s1176 = scalar_lea.vmem [#allocation5], %s1175
        // Predicated region
        $region49: #{tpu_custom_call.1} parent=43 // pred_check
          %p1177 = pneg %p170
        $region50: #{tpu_custom_call.1} parent=43 // pred_check_branch
          %1179 = sbr.rel (%p1177) target = $region52
        $region51: #{tpu_custom_call.1} parent=43 // pred_region
          %s1181 = ssub.s32 128, 128
          %1182 = vsyncadd %s1173, %s1181
          %s1183 = smul.addr %s21, 128
          %s1184 = scalar_lea.hbm %s6, %s1183
          %s1186 = sshll.u32 %s1176, 4
          %s1187 = int_to_ptr.vmem [resolvable:$true] %s1186
          %1189 = dma.vmem_to_hbm [thread:$0]  %s1187, 128, %s1184, %s1173
        $region52: #{tpu_custom_call.1} parent=43 // pred_fallthru
          _
      $region44: #{tpu_custom_call.1} parent=5 // pred_fallthru
        _
      %p1190 = scmp.le.s32.totalorder 2, %s16
      // Predicated region
      $region53: #{tpu_custom_call.1} parent=5 // pred_check
        %p1191 = pneg %p1190
      $region54: #{tpu_custom_call.1} parent=5 // pred_check_branch
        %1193 = sbr.rel (%p1191) target = $region56
      $region55: #{tpu_custom_call.1} parent=5 // pred_region
        %s1194 = ssub.s32 %s16, 2
        // Predicated region
        $region57: #{tpu_custom_call.1} parent=55 // pred_check
          %p1195 = pneg %p176
        $region58: #{tpu_custom_call.1} parent=55 // pred_check_branch
          %1197 = sbr.rel (%p1195) target = $region60
        $region59: #{tpu_custom_call.1} parent=55 // pred_region
          %s1198 = sand.u32 %s161, 1
          %s1199 = scalar_lea.sflag [#allocation4], %s1198
          %s1200 = sand.u32 %s161, 1
          %s1201 = smul.addr %s1200, 8
          %s1202 = scalar_lea.vmem [#allocation5], %s1201
          %1203 = dma.done %s1199, 128
        $region60: #{tpu_custom_call.1} parent=55 // pred_fallthru
          _
      $region56: #{tpu_custom_call.1} parent=5 // pred_fallthru
        _
    $region6: #{tpu_custom_call.1} parent=1 // loop_footer
      %s20 = sadd.s32 1, %s16
    $region7: #{tpu_custom_call.1} parent=1 // loop_footer_branch
      %15 = sbr.rel target = $region3
    $region8: #{tpu_custom_call.1} parent=1 // loop_exit
      _
    %1204 = vsyncpa [#allocation3], 1
    %s1205 = scalar_lea.sflag [#allocation3], 1
    %1206 = vsyncpa %s1205, 1
    %1207 = vsyncpa [#allocation4], 1
    %s1208 = scalar_lea.sflag [#allocation4], 1
    %1209 = vsyncpa %s1208, 1

</llo_original>
